<compile_context>
chip_gen: v6e
topology: v6e:2x2x1
jax: 0.10.0
libtpu: 0.0.40
codegen_flags: <defaults>
</compile_context>

<pallas_src>
import functools
import math

import jax
import jax.numpy as jnp
from jax import lax
from jax.experimental import pallas as pl
from jax.experimental.pallas import tpu as pltpu


def _layer_norm(x, gamma, beta, eps=1e-5):
    mean = jnp.mean(x, axis=-1, keepdims=True)
    var = jnp.mean((x - mean) ** 2, axis=-1, keepdims=True)
    return (x - mean) * lax.rsqrt(var + eps) * gamma + beta


def decoder_layer_kernel(x_ref,
                         wqkv_ref, bqkv_ref, wo_ref, bo_ref,
                         g1_ref, be1_ref,
                         w1_ref, b1_ref, w2_ref, b2_ref,
                         g2_ref, be2_ref,
                         out_ref,
                         q_s, k_s, v_s,
                         *, num_heads, q_tile):
    TQ, D = x_ref.shape          # x block is this batch element's query tile
    H = num_heads
    dh = D // H
    qi = pl.program_id(1)

    # ---- incremental fused QKV projection for THIS tile only ----------------
    # (1/sqrt(dh) is already folded into the Q columns of wqkv/bqkv.)
    x_tile = x_ref[...]                                               # (TQ, D) f32
    qkv = jnp.dot(x_tile.astype(jnp.bfloat16), wqkv_ref[...],
                  preferred_element_type=jnp.float32) + bqkv_ref[...]  # (TQ, 3D)
    # Head relayout.  K is transposed once at write time so later score
    # matmuls contract over K's sublane dim (no per-use XLU transpose).
    for h in range(H):
        q_s[h] = qkv[:, h * dh:(h + 1) * dh].astype(jnp.bfloat16)            # (TQ,dh)
        k_s[qi, h] = qkv[:, D + h * dh:D + (h + 1) * dh].T.astype(jnp.bfloat16)   # (dh,TQ)
        v_s[qi, h] = qkv[:, 2 * D + h * dh:2 * D + (h + 1) * dh].astype(jnp.bfloat16)

    qh = q_s[...]                 # (H, TQ, dh) bf16
    k_diag = k_s[qi]              # (H, dh, TQ) bf16
    v_diag = v_s[qi]              # (H, TQ, dh) bf16

    # ---- causal attention: diagonal tile (static mask) + lower key tiles ----
    rows = lax.broadcasted_iota(jnp.int32, (TQ, TQ), 0)
    cols = lax.broadcasted_iota(jnp.int32, (TQ, TQ), 1)
    neg_mask = jnp.where(cols <= rows, 0.0, -1e30).astype(jnp.float32)

    s_diag = jnp.einsum('hqd,hdk->hqk', qh, k_diag,
                        preferred_element_type=jnp.float32) + neg_mask[None]
    m = jnp.max(s_diag, axis=-1, keepdims=True)                        # (H,TQ,1)
    p = jnp.exp(s_diag - m)
    l = jnp.sum(p, axis=-1, keepdims=True)
    acc = jnp.einsum('hqk,hkd->hqd', p.astype(jnp.bfloat16), v_diag,
                     preferred_element_type=jnp.float32)               # (H,TQ,dh)

    def kv_body(kt, carry):
        m_c, l_c, acc_c = carry
        s = jnp.einsum('hqd,hdk->hqk', qh, k_s[kt],
                       preferred_element_type=jnp.float32)             # no mask needed
        m_new = jnp.maximum(m_c, jnp.max(s, axis=-1, keepdims=True))
        alpha = jnp.exp(m_c - m_new)
        pk = jnp.exp(s - m_new)
        l_new = alpha * l_c + jnp.sum(pk, axis=-1, keepdims=True)
        acc_new = alpha * acc_c + jnp.einsum(
            'hqk,hkd->hqd', pk.astype(jnp.bfloat16), v_s[kt],
            preferred_element_type=jnp.float32)
        return m_new, l_new, acc_new

    m, l, acc = lax.fori_loop(0, qi, kv_body, (m, l, acc))

    att_h = acc * pl.reciprocal(l, approx=True)                        # (H,TQ,dh) f32

    # Output projection: per-head accumulate into one (TQ, D) fp32 buffer
    # (no (H,TQ,D) intermediate, no lane-merging concat).
    att = jnp.zeros((TQ, D), jnp.float32)
    for h in range(H):
        att = att + jnp.dot(att_h[h].astype(jnp.bfloat16),
                            wo_ref[h * dh:(h + 1) * dh, :],
                            preferred_element_type=jnp.float32)
    att = att + bo_ref[...]

    # dropout1: identity at inference
    x1 = _layer_norm(att + x_tile, g1_ref[...], be1_ref[...])

    # ---- feed-forward (d_model -> d_ff -> d_model, ReLU) --------------------
    # TODO(synk): for very large D/d_ff on v7x (64 MiB VMEM), chunk this over
    # d_ff and stream w1/w2 slabs from HBM instead of keeping them resident.
    h1 = jnp.dot(x1.astype(jnp.bfloat16), w1_ref[...],
                 preferred_element_type=jnp.float32) + b1_ref[...]
    h1 = jnp.maximum(h1, 0.0)
    ff = jnp.dot(h1.astype(jnp.bfloat16), w2_ref[...],
                 preferred_element_type=jnp.float32) + b2_ref[...]

    # dropout2: identity at inference
    out_ref[...] = _layer_norm(ff + x1, g2_ref[...], be2_ref[...]).astype(out_ref.dtype)


def _vmem_capacity_bytes():
    try:
        info = pltpu.get_tpu_info()
        cap = getattr(info, "vmem_capacity_bytes", None)
        if cap:
            return int(cap)
    except Exception:
        pass
    return 64 << 20   # conservative (v7x per-TensorCore)


def transformer_decoder_only_layer(x, params, num_heads, q_tile=None):
    """x: (B, S, D) float32.  params: dict of weights (see init_params)."""
    B, S, D = x.shape
    H = num_heads
    assert D % H == 0
    dh = D // H
    d_ff = params["w1"].shape[1]

    vmem_cap = _vmem_capacity_bytes()

    if q_tile is None:
        # 256-row tiles only when VMEM is plentiful (v5e/v6e 128 MiB); 128 on
        # v7x (64 MiB).  Smaller fallbacks for short sequences.
        max_tile = 256 if vmem_cap >= (96 << 20) else 128
        q_tile = S
        for cand in (256, 128, 64, 32, 16, 8):
            if cand <= max_tile and S % cand == 0:
                q_tile = cand
                break
    assert S % q_tile == 0
    num_q = S // q_tile

    # Fold 1/sqrt(dh) into the Q columns of wqkv / bqkv (zero in-kernel cost).
    scale = 1.0 / math.sqrt(dh)
    qscale = jnp.concatenate([jnp.full((D,), scale, jnp.float32),
                              jnp.ones((2 * D,), jnp.float32)])
    wqkv = (params["wqkv"] * qscale[None, :]).astype(jnp.bfloat16)   # (D, 3D)
    bqkv = params["bqkv"] * qscale[None, :]                          # (1, 3D) f32
    wo = params["wo"].astype(jnp.bfloat16)                           # (D, D)
    w1 = params["w1"].astype(jnp.bfloat16)
    w2 = params["w2"].astype(jnp.bfloat16)

    param_vals = [
        wqkv, bqkv, wo, params["bo"],
        params["g1"], params["be1"],
        w1, params["b1"], w2, params["b2"],
        params["g2"], params["be2"],
    ]

    def const_spec(shape):
        zeros = (0,) * len(shape)
        return pl.BlockSpec(shape, lambda b, qi, _z=zeros: _z)

    # TODO(synk): once pipeline_mode=pl.Buffered(1) is confirmed supported on
    # the pallas_call grid pipeline, single-buffer these grid-invariant weight
    # specs to halve their VMEM footprint (matters most on v7x's 64 MiB VMEM).
    in_specs = [pl.BlockSpec((None, q_tile, D), lambda b, qi: (b, qi, 0))]
    in_specs += [const_spec(p.shape) for p in param_vals]

    # VMEM budget: double-buffered blocks/weights + K/V scratch + live temps.
    wbytes = 2 * (3 * D * D + D * D + D * d_ff + d_ff * D)           # bf16 weights
    pbytes = 4 * (3 * D + D + d_ff + 5 * D)                          # f32 biases/LN
    iobytes = 4 * (q_tile * D) * 2                                   # x + out tile
    scratch = 2 * (H * q_tile * dh + 2 * S * D)                      # bf16 q/k/v scratch
    temps = 4 * (3 * q_tile * D                                      # qkv f32
                 + 2 * H * q_tile * q_tile                           # scores + exp
                 + 2 * H * q_tile * dh                               # acc, att_h
                 + q_tile * d_ff                                     # FFN hidden
                 + 6 * q_tile * D)                                   # att/x1/ff/LN temps
    vmem_need = 2 * (wbytes + pbytes + iobytes) + scratch + temps + (4 << 20)
    vmem_limit = int(min(max(vmem_need, 32 << 20), vmem_cap - (2 << 20)))

    kernel = functools.partial(decoder_layer_kernel, num_heads=H, q_tile=q_tile)

    return pl.pallas_call(
        kernel,
        out_shape=jax.ShapeDtypeStruct((B, S, D), x.dtype),
        grid_spec=pltpu.PrefetchScalarGridSpec(
            num_scalar_prefetch=0,
            grid=(B, num_q),
            in_specs=in_specs,
            out_specs=pl.BlockSpec((None, q_tile, D), lambda b, qi: (b, qi, 0)),
            scratch_shapes=[
                pltpu.VMEM((H, q_tile, dh), jnp.bfloat16),            # Q (current tile)
                pltpu.VMEM((num_q, H, dh, q_tile), jnp.bfloat16),     # K (pre-transposed)
                pltpu.VMEM((num_q, H, q_tile, dh), jnp.bfloat16),     # V
            ],
        ),
        # NOTE: the q-tile axis carries scratch state and must stay "arbitrary".
        compiler_params=pltpu.CompilerParams(
            dimension_semantics=("parallel", "arbitrary"),
            vmem_limit_bytes=vmem_limit),
    )(x, *param_vals)


def init_params(key, d_model, d_ff):
    ks = jax.random.split(key, 10)
    s = 0.05
    return {
        "wqkv": s * jax.random.normal(ks[0], (d_model, 3 * d_model), jnp.float32),
        "bqkv": s * jax.random.normal(ks[1], (1, 3 * d_model), jnp.float32),
        "wo": s * jax.random.normal(ks[2], (d_model, d_model), jnp.float32),
        "bo": s * jax.random.normal(ks[3], (1, d_model), jnp.float32),
        "g1": 1.0 + 0.1 * jax.random.normal(ks[4], (1, d_model), jnp.float32),
        "be1": 0.05 * jax.random.normal(ks[5], (1, d_model), jnp.float32),
        "w1": s * jax.random.normal(ks[6], (d_model, d_ff), jnp.float32),
        "b1": s * jax.random.normal(ks[7], (1, d_ff), jnp.float32),
        "w2": s * jax.random.normal(ks[8], (d_ff, d_model), jnp.float32),
        "b2": jnp.zeros((1, d_model), jnp.float32),
        "g2": 1.0 + 0.1 * jax.random.normal(ks[9], (1, d_model), jnp.float32),
        "be2": jnp.zeros((1, d_model), jnp.float32),
    }


def reference(x, p, num_heads):
    """Pure-JAX fp32 reference of the same forward pass (for validation)."""
    B, S, D = x.shape
    dh = D // num_heads
    wq, wk, wv = p["wqkv"][:, :D], p["wqkv"][:, D:2 * D], p["wqkv"][:, 2 * D:]
    bq, bk, bv = p["bqkv"][0, :D], p["bqkv"][0, D:2 * D], p["bqkv"][0, 2 * D:]

    def per_batch(xb):
        q = (xb @ wq + bq).reshape(S, num_heads, dh).transpose(1, 0, 2)
        k = (xb @ wk + bk).reshape(S, num_heads, dh).transpose(1, 0, 2)
        v = (xb @ wv + bv).reshape(S, num_heads, dh).transpose(1, 0, 2)
        scores = jnp.einsum("hqd,hkd->hqk", q, k) / jnp.sqrt(jnp.float32(dh))
        mask = jnp.tril(jnp.ones((S, S), bool))
        scores = jnp.where(mask[None], scores, -jnp.inf)
        prob = jax.nn.softmax(scores, axis=-1)
        att = jnp.einsum("hqk,hkd->hqd", prob, v).transpose(1, 0, 2).reshape(S, D)
        att = att @ p["wo"] + p["bo"][0]

        def ln(z, g, b):
            m = z.mean(-1, keepdims=True)
            var = ((z - m) ** 2).mean(-1, keepdims=True)
            return (z - m) / jnp.sqrt(var + 1e-5) * g[0] + b[0]

        x1 = ln(att + xb, p["g1"], p["be1"])
        ff = jnp.maximum(x1 @ p["w1"] + p["b1"][0], 0.0) @ p["w2"] + p["b2"][0]
        return ln(ff + x1, p["g2"], p["be2"])

    return jax.vmap(per_batch)(x)


if __name__ == "__main__":
    B, S, d_model, num_heads, d_ff = 2, 16, 32, 4, 64

    key = jax.random.PRNGKey(0)
    kx, kp = jax.random.split(key)
    x = jax.random.normal(kx, (B, S, d_model), jnp.float32)
    params = init_params(kp, d_model, d_ff)

    # q_tile=8 -> two query tiles per batch element, exercising the causal
    # key-tile loop and the incremental K/V scratch fill.
    out = transformer_decoder_only_layer(x, params, num_heads, q_tile=8)
    out = jax.block_until_ready(out)

    ref = jax.block_until_ready(reference(x, params, num_heads))
    assert out.shape == (B, S, d_model)
    # bf16 MXU matmuls + approximate reciprocal => bf16-aware tolerance.
    err = float(jnp.max(jnp.abs(out - ref)))
    assert err < 5e-2, f"mismatch vs reference: max abs err = {err}"

    print("KERNEL_OK")
</pallas_src>

<mosaic_0001>
module attributes {stable_mosaic.version = 11 : i64} {
  func.func @decoder_layer_kernel(%arg0: i32, %arg1: i32, %arg2: memref<1x8x32xf32, #tpu.memory_space<vmem>>, %arg3: memref<32x96xbf16, #tpu.memory_space<vmem>>, %arg4: memref<1x96xf32, #tpu.memory_space<vmem>>, %arg5: memref<32x32xbf16, #tpu.memory_space<vmem>>, %arg6: memref<1x32xf32, #tpu.memory_space<vmem>>, %arg7: memref<1x32xf32, #tpu.memory_space<vmem>>, %arg8: memref<1x32xf32, #tpu.memory_space<vmem>>, %arg9: memref<32x64xbf16, #tpu.memory_space<vmem>>, %arg10: memref<1x64xf32, #tpu.memory_space<vmem>>, %arg11: memref<64x32xbf16, #tpu.memory_space<vmem>>, %arg12: memref<1x32xf32, #tpu.memory_space<vmem>>, %arg13: memref<1x32xf32, #tpu.memory_space<vmem>>, %arg14: memref<1x32xf32, #tpu.memory_space<vmem>>, %arg15: memref<1x8x32xf32, #tpu.memory_space<vmem>>, %arg16: memref<4x8x8xbf16, #tpu.memory_space<vmem>>, %arg17: memref<2x4x8x8xbf16, #tpu.memory_space<vmem>>, %arg18: memref<2x4x8x8xbf16, #tpu.memory_space<vmem>>) attributes {dimension_semantics = [#tpu.dimension_semantics<parallel>, #tpu.dimension_semantics<arbitrary>], iteration_bounds = array<i64: 2, 2>, scalar_prefetch = 0 : i64, scratch_operands = 3 : i64, tpu.core_type = #tpu.core_type<tc>, window_params = [{transform_indices = @transform_0, window_bounds = array<i64: 1, 8, 32>}, {pipeline_mode = #tpu.pipeline_mode<synchronous>, transform_indices = @transform_1, window_bounds = array<i64: 32, 96>}, {pipeline_mode = #tpu.pipeline_mode<synchronous>, transform_indices = @transform_2, window_bounds = array<i64: 1, 96>}, {pipeline_mode = #tpu.pipeline_mode<synchronous>, transform_indices = @transform_3, window_bounds = array<i64: 32, 32>}, {pipeline_mode = #tpu.pipeline_mode<synchronous>, transform_indices = @transform_4, window_bounds = array<i64: 1, 32>}, {pipeline_mode = #tpu.pipeline_mode<synchronous>, transform_indices = @transform_5, window_bounds = array<i64: 1, 32>}, {pipeline_mode = #tpu.pipeline_mode<synchronous>, transform_indices = @transform_6, window_bounds = array<i64: 1, 32>}, {pipeline_mode = #tpu.pipeline_mode<synchronous>, transform_indices = @transform_7, window_bounds = array<i64: 32, 64>}, {pipeline_mode = #tpu.pipeline_mode<synchronous>, transform_indices = @transform_8, window_bounds = array<i64: 1, 64>}, {pipeline_mode = #tpu.pipeline_mode<synchronous>, transform_indices = @transform_9, window_bounds = array<i64: 64, 32>}, {pipeline_mode = #tpu.pipeline_mode<synchronous>, transform_indices = @transform_10, window_bounds = array<i64: 1, 32>}, {pipeline_mode = #tpu.pipeline_mode<synchronous>, transform_indices = @transform_11, window_bounds = array<i64: 1, 32>}, {pipeline_mode = #tpu.pipeline_mode<synchronous>, transform_indices = @transform_12, window_bounds = array<i64: 1, 32>}, {transform_indices = @transform_13, window_bounds = array<i64: 1, 8, 32>}]} {
    %c0 = arith.constant 0 : index
    %c0_0 = arith.constant 0 : index
    %c0_1 = arith.constant 0 : index
    %0 = vector.load %arg2[%c0, %c0_0, %c0_1] : memref<1x8x32xf32, #tpu.memory_space<vmem>>, vector<1x8x32xf32>
    %1 = vector.shape_cast %0 : vector<1x8x32xf32> to vector<8x32xf32>
    %2 = arith.truncf %1 : vector<8x32xf32> to vector<8x32xbf16>
    %c0_2 = arith.constant 0 : index
    %c0_3 = arith.constant 0 : index
    %3 = vector.load %arg3[%c0_2, %c0_3] : memref<32x96xbf16, #tpu.memory_space<vmem>>, vector<32x96xbf16>
    %cst = arith.constant dense<0.000000e+00> : vector<8x96xf32>
    %4 = tpu.matmul %2, %3, %cst {dimension_numbers = #tpu.dot_dimension_numbers<[1], [0], [0], [1], [0, 0, 1, 1], [], []>} : vector<8x32xbf16>, vector<32x96xbf16>, vector<8x96xf32> -> vector<8x96xf32>
    %c0_4 = arith.constant 0 : index
    %c0_5 = arith.constant 0 : index
    %5 = vector.load %arg4[%c0_4, %c0_5] : memref<1x96xf32, #tpu.memory_space<vmem>>, vector<1x96xf32>
    %6 = vector.broadcast %5 : vector<1x96xf32> to vector<8x96xf32>
    %7 = arith.addf %4, %6 : vector<8x96xf32>
    %8 = vector.extract_strided_slice %7 {offsets = [0, 0], sizes = [8, 8], strides = [1, 1]} : vector<8x96xf32> to vector<8x8xf32>
    %9 = arith.truncf %8 : vector<8x8xf32> to vector<8x8xbf16>
    %c0_6 = arith.constant 0 : index
    %c0_7 = arith.constant 0 : index
    %c0_8 = arith.constant 0 : index
    %10 = vector.load %arg16[%c0_6, %c0_7, %c0_8] : memref<4x8x8xbf16, #tpu.memory_space<vmem>>, vector<1x8x8xbf16>
    %11 = vector.shape_cast %10 : vector<1x8x8xbf16> to vector<8x8xbf16>
    %12 = vector.shape_cast %9 : vector<8x8xbf16> to vector<1x8x8xbf16>
    tpu.vector_store %arg16[%c0_6, %c0_7, %c0_8], %12 {strides = array<i32>} : memref<4x8x8xbf16, #tpu.memory_space<vmem>>, vector<1x8x8xbf16>,
    %13 = vector.extract_strided_slice %7 {offsets = [0, 32], sizes = [8, 8], strides = [1, 1]} : vector<8x96xf32> to vector<8x8xf32>
    %14 = tpu.transpose %13, [1, 0] : vector<8x8xf32> -> vector<8x8xf32>
    %15 = arith.truncf %14 : vector<8x8xf32> to vector<8x8xbf16>
    %16 = arith.index_cast %arg1 : i32 to index
    %c0_9 = arith.constant 0 : index
    %c0_10 = arith.constant 0 : index
    %c0_11 = arith.constant 0 : index
    %17 = vector.load %arg17[%16, %c0_9, %c0_10, %c0_11] : memref<2x4x8x8xbf16, #tpu.memory_space<vmem>>, vector<1x1x8x8xbf16>
    %18 = vector.shape_cast %17 : vector<1x1x8x8xbf16> to vector<8x8xbf16>
    %19 = vector.shape_cast %15 : vector<8x8xbf16> to vector<1x1x8x8xbf16>
    tpu.vector_store %arg17[%16, %c0_9, %c0_10, %c0_11], %19 {strides = array<i32>} : memref<2x4x8x8xbf16, #tpu.memory_space<vmem>>, vector<1x1x8x8xbf16>,
    %20 = vector.extract_strided_slice %7 {offsets = [0, 64], sizes = [8, 8], strides = [1, 1]} : vector<8x96xf32> to vector<8x8xf32>
    %21 = arith.truncf %20 : vector<8x8xf32> to vector<8x8xbf16>
    %22 = arith.index_cast %arg1 : i32 to index
    %c0_12 = arith.constant 0 : index
    %c0_13 = arith.constant 0 : index
    %c0_14 = arith.constant 0 : index
    %23 = vector.load %arg18[%22, %c0_12, %c0_13, %c0_14] : memref<2x4x8x8xbf16, #tpu.memory_space<vmem>>, vector<1x1x8x8xbf16>
    %24 = vector.shape_cast %23 : vector<1x1x8x8xbf16> to vector<8x8xbf16>
    %25 = vector.shape_cast %21 : vector<8x8xbf16> to vector<1x1x8x8xbf16>
    tpu.vector_store %arg18[%22, %c0_12, %c0_13, %c0_14], %25 {strides = array<i32>} : memref<2x4x8x8xbf16, #tpu.memory_space<vmem>>, vector<1x1x8x8xbf16>,
    %26 = vector.extract_strided_slice %7 {offsets = [0, 8], sizes = [8, 8], strides = [1, 1]} : vector<8x96xf32> to vector<8x8xf32>
    %27 = arith.truncf %26 : vector<8x8xf32> to vector<8x8xbf16>
    %c1 = arith.constant 1 : index
    %c0_15 = arith.constant 0 : index
    %c0_16 = arith.constant 0 : index
    %28 = vector.load %arg16[%c1, %c0_15, %c0_16] : memref<4x8x8xbf16, #tpu.memory_space<vmem>>, vector<1x8x8xbf16>
    %29 = vector.shape_cast %28 : vector<1x8x8xbf16> to vector<8x8xbf16>
    %30 = vector.shape_cast %27 : vector<8x8xbf16> to vector<1x8x8xbf16>
    tpu.vector_store %arg16[%c1, %c0_15, %c0_16], %30 {strides = array<i32>} : memref<4x8x8xbf16, #tpu.memory_space<vmem>>, vector<1x8x8xbf16>,
    %31 = vector.extract_strided_slice %7 {offsets = [0, 40], sizes = [8, 8], strides = [1, 1]} : vector<8x96xf32> to vector<8x8xf32>
    %32 = tpu.transpose %31, [1, 0] : vector<8x8xf32> -> vector<8x8xf32>
    %33 = arith.truncf %32 : vector<8x8xf32> to vector<8x8xbf16>
    %34 = arith.index_cast %arg1 : i32 to index
    %c1_17 = arith.constant 1 : index
    %c0_18 = arith.constant 0 : index
    %c0_19 = arith.constant 0 : index
    %35 = vector.load %arg17[%34, %c1_17, %c0_18, %c0_19] : memref<2x4x8x8xbf16, #tpu.memory_space<vmem>>, vector<1x1x8x8xbf16>
    %36 = vector.shape_cast %35 : vector<1x1x8x8xbf16> to vector<8x8xbf16>
    %37 = vector.shape_cast %33 : vector<8x8xbf16> to vector<1x1x8x8xbf16>
    tpu.vector_store %arg17[%34, %c1_17, %c0_18, %c0_19], %37 {strides = array<i32>} : memref<2x4x8x8xbf16, #tpu.memory_space<vmem>>, vector<1x1x8x8xbf16>,
    %38 = vector.extract_strided_slice %7 {offsets = [0, 72], sizes = [8, 8], strides = [1, 1]} : vector<8x96xf32> to vector<8x8xf32>
    %39 = arith.truncf %38 : vector<8x8xf32> to vector<8x8xbf16>
    %40 = arith.index_cast %arg1 : i32 to index
    %c1_20 = arith.constant 1 : index
    %c0_21 = arith.constant 0 : index
    %c0_22 = arith.constant 0 : index
    %41 = vector.load %arg18[%40, %c1_20, %c0_21, %c0_22] : memref<2x4x8x8xbf16, #tpu.memory_space<vmem>>, vector<1x1x8x8xbf16>
    %42 = vector.shape_cast %41 : vector<1x1x8x8xbf16> to vector<8x8xbf16>
    %43 = vector.shape_cast %39 : vector<8x8xbf16> to vector<1x1x8x8xbf16>
    tpu.vector_store %arg18[%40, %c1_20, %c0_21, %c0_22], %43 {strides = array<i32>} : memref<2x4x8x8xbf16, #tpu.memory_space<vmem>>, vector<1x1x8x8xbf16>,
    %44 = vector.extract_strided_slice %7 {offsets = [0, 16], sizes = [8, 8], strides = [1, 1]} : vector<8x96xf32> to vector<8x8xf32>
    %45 = arith.truncf %44 : vector<8x8xf32> to vector<8x8xbf16>
    %c2 = arith.constant 2 : index
    %c0_23 = arith.constant 0 : index
    %c0_24 = arith.constant 0 : index
    %46 = vector.load %arg16[%c2, %c0_23, %c0_24] : memref<4x8x8xbf16, #tpu.memory_space<vmem>>, vector<1x8x8xbf16>
    %47 = vector.shape_cast %46 : vector<1x8x8xbf16> to vector<8x8xbf16>
    %48 = vector.shape_cast %45 : vector<8x8xbf16> to vector<1x8x8xbf16>
    tpu.vector_store %arg16[%c2, %c0_23, %c0_24], %48 {strides = array<i32>} : memref<4x8x8xbf16, #tpu.memory_space<vmem>>, vector<1x8x8xbf16>,
    %49 = vector.extract_strided_slice %7 {offsets = [0, 48], sizes = [8, 8], strides = [1, 1]} : vector<8x96xf32> to vector<8x8xf32>
    %50 = tpu.transpose %49, [1, 0] : vector<8x8xf32> -> vector<8x8xf32>
    %51 = arith.truncf %50 : vector<8x8xf32> to vector<8x8xbf16>
    %52 = arith.index_cast %arg1 : i32 to index
    %c2_25 = arith.constant 2 : index
    %c0_26 = arith.constant 0 : index
    %c0_27 = arith.constant 0 : index
    %53 = vector.load %arg17[%52, %c2_25, %c0_26, %c0_27] : memref<2x4x8x8xbf16, #tpu.memory_space<vmem>>, vector<1x1x8x8xbf16>
    %54 = vector.shape_cast %53 : vector<1x1x8x8xbf16> to vector<8x8xbf16>
    %55 = vector.shape_cast %51 : vector<8x8xbf16> to vector<1x1x8x8xbf16>
    tpu.vector_store %arg17[%52, %c2_25, %c0_26, %c0_27], %55 {strides = array<i32>} : memref<2x4x8x8xbf16, #tpu.memory_space<vmem>>, vector<1x1x8x8xbf16>,
    %56 = vector.extract_strided_slice %7 {offsets = [0, 80], sizes = [8, 8], strides = [1, 1]} : vector<8x96xf32> to vector<8x8xf32>
    %57 = arith.truncf %56 : vector<8x8xf32> to vector<8x8xbf16>
    %58 = arith.index_cast %arg1 : i32 to index
    %c2_28 = arith.constant 2 : index
    %c0_29 = arith.constant 0 : index
    %c0_30 = arith.constant 0 : index
    %59 = vector.load %arg18[%58, %c2_28, %c0_29, %c0_30] : memref<2x4x8x8xbf16, #tpu.memory_space<vmem>>, vector<1x1x8x8xbf16>
    %60 = vector.shape_cast %59 : vector<1x1x8x8xbf16> to vector<8x8xbf16>
    %61 = vector.shape_cast %57 : vector<8x8xbf16> to vector<1x1x8x8xbf16>
    tpu.vector_store %arg18[%58, %c2_28, %c0_29, %c0_30], %61 {strides = array<i32>} : memref<2x4x8x8xbf16, #tpu.memory_space<vmem>>, vector<1x1x8x8xbf16>,
    %62 = vector.extract_strided_slice %7 {offsets = [0, 24], sizes = [8, 8], strides = [1, 1]} : vector<8x96xf32> to vector<8x8xf32>
    %63 = arith.truncf %62 : vector<8x8xf32> to vector<8x8xbf16>
    %c3 = arith.constant 3 : index
    %c0_31 = arith.constant 0 : index
    %c0_32 = arith.constant 0 : index
    %64 = vector.load %arg16[%c3, %c0_31, %c0_32] : memref<4x8x8xbf16, #tpu.memory_space<vmem>>, vector<1x8x8xbf16>
    %65 = vector.shape_cast %64 : vector<1x8x8xbf16> to vector<8x8xbf16>
    %66 = vector.shape_cast %63 : vector<8x8xbf16> to vector<1x8x8xbf16>
    tpu.vector_store %arg16[%c3, %c0_31, %c0_32], %66 {strides = array<i32>} : memref<4x8x8xbf16, #tpu.memory_space<vmem>>, vector<1x8x8xbf16>,
    %67 = vector.extract_strided_slice %7 {offsets = [0, 56], sizes = [8, 8], strides = [1, 1]} : vector<8x96xf32> to vector<8x8xf32>
    %68 = tpu.transpose %67, [1, 0] : vector<8x8xf32> -> vector<8x8xf32>
    %69 = arith.truncf %68 : vector<8x8xf32> to vector<8x8xbf16>
    %70 = arith.index_cast %arg1 : i32 to index
    %c3_33 = arith.constant 3 : index
    %c0_34 = arith.constant 0 : index
    %c0_35 = arith.constant 0 : index
    %71 = vector.load %arg17[%70, %c3_33, %c0_34, %c0_35] : memref<2x4x8x8xbf16, #tpu.memory_space<vmem>>, vector<1x1x8x8xbf16>
    %72 = vector.shape_cast %71 : vector<1x1x8x8xbf16> to vector<8x8xbf16>
    %73 = vector.shape_cast %69 : vector<8x8xbf16> to vector<1x1x8x8xbf16>
    tpu.vector_store %arg17[%70, %c3_33, %c0_34, %c0_35], %73 {strides = array<i32>} : memref<2x4x8x8xbf16, #tpu.memory_space<vmem>>, vector<1x1x8x8xbf16>,
    %74 = vector.extract_strided_slice %7 {offsets = [0, 88], sizes = [8, 8], strides = [1, 1]} : vector<8x96xf32> to vector<8x8xf32>
    %75 = arith.truncf %74 : vector<8x8xf32> to vector<8x8xbf16>
    %76 = arith.index_cast %arg1 : i32 to index
    %c3_36 = arith.constant 3 : index
    %c0_37 = arith.constant 0 : index
    %c0_38 = arith.constant 0 : index
    %77 = vector.load %arg18[%76, %c3_36, %c0_37, %c0_38] : memref<2x4x8x8xbf16, #tpu.memory_space<vmem>>, vector<1x1x8x8xbf16>
    %78 = vector.shape_cast %77 : vector<1x1x8x8xbf16> to vector<8x8xbf16>
    %79 = vector.shape_cast %75 : vector<8x8xbf16> to vector<1x1x8x8xbf16>
    tpu.vector_store %arg18[%76, %c3_36, %c0_37, %c0_38], %79 {strides = array<i32>} : memref<2x4x8x8xbf16, #tpu.memory_space<vmem>>, vector<1x1x8x8xbf16>,
    %c0_39 = arith.constant 0 : index
    %c0_40 = arith.constant 0 : index
    %c0_41 = arith.constant 0 : index
    %80 = vector.load %arg16[%c0_39, %c0_40, %c0_41] : memref<4x8x8xbf16, #tpu.memory_space<vmem>>, vector<4x8x8xbf16>
    %81 = arith.index_cast %arg1 : i32 to index
    %c0_42 = arith.constant 0 : index
    %c0_43 = arith.constant 0 : index
    %c0_44 = arith.constant 0 : index
    %82 = vector.load %arg17[%81, %c0_42, %c0_43, %c0_44] : memref<2x4x8x8xbf16, #tpu.memory_space<vmem>>, vector<1x4x8x8xbf16>
    %83 = vector.shape_cast %82 : vector<1x4x8x8xbf16> to vector<4x8x8xbf16>
    %84 = arith.index_cast %arg1 : i32 to index
    %c0_45 = arith.constant 0 : index
    %c0_46 = arith.constant 0 : index
    %c0_47 = arith.constant 0 : index
    %85 = vector.load %arg18[%84, %c0_45, %c0_46, %c0_47] : memref<2x4x8x8xbf16, #tpu.memory_space<vmem>>, vector<1x4x8x8xbf16>
    %86 = vector.shape_cast %85 : vector<1x4x8x8xbf16> to vector<4x8x8xbf16>
    %87 = tpu.iota {dimensions = array<i32: 0>} : vector<8x8xi32>
    %88 = tpu.iota {dimensions = array<i32: 1>} : vector<8x8xi32>
    %89 = arith.cmpi sle, %88, %87 : vector<8x8xi32>
    %cst_48 = arith.constant 0.000000e+00 : f32
    %cst_49 = arith.constant -1.000000e+30 : f32
    %90 = vector.broadcast %cst_48 : f32 to vector<8x8xf32>
    %91 = vector.broadcast %cst_49 : f32 to vector<8x8xf32>
    %92 = arith.select %89, %90, %91 : vector<8x8xi1>, vector<8x8xf32>
    "tpu.trace_start"() <{level = 10 : i32, message = "hqd,hdk->hqk"}> : () -> ()
    %cst_50 = arith.constant dense<0.000000e+00> : vector<4x8x8xf32>
    %93 = tpu.matmul %80, %83, %cst_50 {dimension_numbers = #tpu.dot_dimension_numbers<[2], [1], [1], [2], [0, 0, 0, 1, 1, 2], [0], [0]>} : vector<4x8x8xbf16>, vector<4x8x8xbf16>, vector<4x8x8xf32> -> vector<4x8x8xf32>
    "tpu.trace_stop"() : () -> ()
    %94 = vector.shape_cast %92 : vector<8x8xf32> to vector<1x8x8xf32>
    %95 = vector.broadcast %94 : vector<1x8x8xf32> to vector<4x8x8xf32>
    %96 = arith.addf %93, %95 : vector<4x8x8xf32>
    %cst_51 = arith.constant dense<0xFF800000> : vector<4x8xf32>
    %97 = vector.multi_reduction <maximumf>, %96, %cst_51 [2] : vector<4x8x8xf32> to vector<4x8xf32>
    %98 = vector.shape_cast %97 : vector<4x8xf32> to vector<4x8x1xf32>
    %99 = vector.broadcast %98 : vector<4x8x1xf32> to vector<4x8x8xf32>
    %100 = arith.subf %96, %99 : vector<4x8x8xf32>
    %101 = math.exp %100 : vector<4x8x8xf32>
    %cst_52 = arith.constant dense<0.000000e+00> : vector<4x8xf32>
    %102 = vector.multi_reduction <add>, %101, %cst_52 [2] : vector<4x8x8xf32> to vector<4x8xf32>
    %103 = vector.shape_cast %102 : vector<4x8xf32> to vector<4x8x1xf32>
    %104 = arith.truncf %101 : vector<4x8x8xf32> to vector<4x8x8xbf16>
    "tpu.trace_start"() <{level = 10 : i32, message = "hqk,hkd->hqd"}> : () -> ()
    %cst_53 = arith.constant dense<0.000000e+00> : vector<4x8x8xf32>
    %105 = tpu.matmul %104, %86, %cst_53 {dimension_numbers = #tpu.dot_dimension_numbers<[2], [1], [1], [2], [0, 0, 0, 1, 1, 2], [0], [0]>} : vector<4x8x8xbf16>, vector<4x8x8xbf16>, vector<4x8x8xf32> -> vector<4x8x8xf32>
    %c0_i32 = arith.constant 0 : i32
    "tpu.trace_stop"() : () -> ()
    %106 = arith.subi %arg1, %c0_i32 : i32
    %107 = arith.addi %c0_i32, %106 : i32
    %c1_i32 = arith.constant 1 : i32
    %108:3 = scf.for %arg19 = %c0_i32 to %107 step %c1_i32 iter_args(%arg20 = %98, %arg21 = %103, %arg22 = %105) -> (vector<4x8x1xf32>, vector<4x8x1xf32>, vector<4x8x8xf32>)  : i32 {
      %207 = arith.index_cast %arg19 : i32 to index
      %c0_98 = arith.constant 0 : index
      %c0_99 = arith.constant 0 : index
      %c0_100 = arith.constant 0 : index
      %208 = vector.load %arg17[%207, %c0_98, %c0_99, %c0_100] : memref<2x4x8x8xbf16, #tpu.memory_space<vmem>>, vector<1x4x8x8xbf16>
      %209 = vector.shape_cast %208 : vector<1x4x8x8xbf16> to vector<4x8x8xbf16>
      "tpu.trace_start"() <{level = 10 : i32, message = "hqd,hdk->hqk"}> : () -> ()
      %cst_101 = arith.constant dense<0.000000e+00> : vector<4x8x8xf32>
      %210 = tpu.matmul %80, %209, %cst_101 {dimension_numbers = #tpu.dot_dimension_numbers<[2], [1], [1], [2], [0, 0, 0, 1, 1, 2], [0], [0]>} : vector<4x8x8xbf16>, vector<4x8x8xbf16>, vector<4x8x8xf32> -> vector<4x8x8xf32>
      "tpu.trace_stop"() : () -> ()
      %cst_102 = arith.constant dense<0xFF800000> : vector<4x8xf32>
      %211 = vector.multi_reduction <maximumf>, %210, %cst_102 [2] : vector<4x8x8xf32> to vector<4x8xf32>
      %212 = vector.shape_cast %211 : vector<4x8xf32> to vector<4x8x1xf32>
      %213 = arith.maximumf %arg20, %212 : vector<4x8x1xf32>
      %214 = arith.subf %arg20, %213 : vector<4x8x1xf32>
      %215 = math.exp %214 : vector<4x8x1xf32>
      %216 = vector.broadcast %213 : vector<4x8x1xf32> to vector<4x8x8xf32>
      %217 = arith.subf %210, %216 : vector<4x8x8xf32>
      %218 = math.exp %217 : vector<4x8x8xf32>
      %219 = arith.mulf %215, %arg21 : vector<4x8x1xf32>
      %cst_103 = arith.constant dense<0.000000e+00> : vector<4x8xf32>
      %220 = vector.multi_reduction <add>, %218, %cst_103 [2] : vector<4x8x8xf32> to vector<4x8xf32>
      %221 = vector.shape_cast %220 : vector<4x8xf32> to vector<4x8x1xf32>
      %222 = arith.addf %219, %221 : vector<4x8x1xf32>
      %223 = vector.broadcast %215 : vector<4x8x1xf32> to vector<4x8x8xf32>
      %224 = arith.mulf %223, %arg22 : vector<4x8x8xf32>
      %225 = arith.truncf %218 : vector<4x8x8xf32> to vector<4x8x8xbf16>
      %226 = arith.index_cast %arg19 : i32 to index
      %c0_104 = arith.constant 0 : index
      %c0_105 = arith.constant 0 : index
      %c0_106 = arith.constant 0 : index
      %227 = vector.load %arg18[%226, %c0_104, %c0_105, %c0_106] : memref<2x4x8x8xbf16, #tpu.memory_space<vmem>>, vector<1x4x8x8xbf16>
      %228 = vector.shape_cast %227 : vector<1x4x8x8xbf16> to vector<4x8x8xbf16>
      "tpu.trace_start"() <{level = 10 : i32, message = "hqk,hkd->hqd"}> : () -> ()
      %cst_107 = arith.constant dense<0.000000e+00> : vector<4x8x8xf32>
      %229 = tpu.matmul %225, %228, %cst_107 {dimension_numbers = #tpu.dot_dimension_numbers<[2], [1], [1], [2], [0, 0, 0, 1, 1, 2], [0], [0]>} : vector<4x8x8xbf16>, vector<4x8x8xbf16>, vector<4x8x8xf32> -> vector<4x8x8xf32>
      "tpu.trace_stop"() : () -> ()
      %230 = arith.addf %224, %229 : vector<4x8x8xf32>
      scf.yield %213, %222, %230 : vector<4x8x1xf32>, vector<4x8x1xf32>, vector<4x8x8xf32>
    }
    %109 = tpu.reciprocal %108#1 {approx = true} : vector<4x8x1xf32> -> vector<4x8x1xf32>
    %110 = vector.broadcast %109 : vector<4x8x1xf32> to vector<4x8x8xf32>
    %111 = arith.mulf %108#2, %110 : vector<4x8x8xf32>
    %cst_54 = arith.constant 0.000000e+00 : f32
    %112 = vector.broadcast %cst_54 : f32 to vector<8x32xf32>
    %113 = vector.extract_strided_slice %111 {offsets = [0, 0, 0], sizes = [1, 8, 8], strides = [1, 1, 1]} : vector<4x8x8xf32> to vector<1x8x8xf32>
    %114 = vector.shape_cast %113 : vector<1x8x8xf32> to vector<8x8xf32>
    %115 = arith.truncf %114 : vector<8x8xf32> to vector<8x8xbf16>
    %c0_55 = arith.constant 0 : index
    %c0_56 = arith.constant 0 : index
    %116 = vector.load %arg5[%c0_55, %c0_56] : memref<32x32xbf16, #tpu.memory_space<vmem>>, vector<8x32xbf16>
    %cst_57 = arith.constant dense<0.000000e+00> : vector<8x32xf32>
    %117 = tpu.matmul %115, %116, %cst_57 {dimension_numbers = #tpu.dot_dimension_numbers<[1], [0], [0], [1], [0, 0, 1, 1], [], []>} : vector<8x8xbf16>, vector<8x32xbf16>, vector<8x32xf32> -> vector<8x32xf32>
    %118 = arith.addf %112, %117 : vector<8x32xf32>
    %119 = vector.extract_strided_slice %111 {offsets = [1, 0, 0], sizes = [1, 8, 8], strides = [1, 1, 1]} : vector<4x8x8xf32> to vector<1x8x8xf32>
    %120 = vector.shape_cast %119 : vector<1x8x8xf32> to vector<8x8xf32>
    %121 = arith.truncf %120 : vector<8x8xf32> to vector<8x8xbf16>
    %c8 = arith.constant 8 : index
    %c0_58 = arith.constant 0 : index
    %122 = vector.load %arg5[%c8, %c0_58] : memref<32x32xbf16, #tpu.memory_space<vmem>>, vector<8x32xbf16>
    %cst_59 = arith.constant dense<0.000000e+00> : vector<8x32xf32>
    %123 = tpu.matmul %121, %122, %cst_59 {dimension_numbers = #tpu.dot_dimension_numbers<[1], [0], [0], [1], [0, 0, 1, 1], [], []>} : vector<8x8xbf16>, vector<8x32xbf16>, vector<8x32xf32> -> vector<8x32xf32>
    %124 = arith.addf %118, %123 : vector<8x32xf32>
    %125 = vector.extract_strided_slice %111 {offsets = [2, 0, 0], sizes = [1, 8, 8], strides = [1, 1, 1]} : vector<4x8x8xf32> to vector<1x8x8xf32>
    %126 = vector.shape_cast %125 : vector<1x8x8xf32> to vector<8x8xf32>
    %127 = arith.truncf %126 : vector<8x8xf32> to vector<8x8xbf16>
    %c16 = arith.constant 16 : index
    %c0_60 = arith.constant 0 : index
    %128 = vector.load %arg5[%c16, %c0_60] : memref<32x32xbf16, #tpu.memory_space<vmem>>, vector<8x32xbf16>
    %cst_61 = arith.constant dense<0.000000e+00> : vector<8x32xf32>
    %129 = tpu.matmul %127, %128, %cst_61 {dimension_numbers = #tpu.dot_dimension_numbers<[1], [0], [0], [1], [0, 0, 1, 1], [], []>} : vector<8x8xbf16>, vector<8x32xbf16>, vector<8x32xf32> -> vector<8x32xf32>
    %130 = arith.addf %124, %129 : vector<8x32xf32>
    %131 = vector.extract_strided_slice %111 {offsets = [3, 0, 0], sizes = [1, 8, 8], strides = [1, 1, 1]} : vector<4x8x8xf32> to vector<1x8x8xf32>
    %132 = vector.shape_cast %131 : vector<1x8x8xf32> to vector<8x8xf32>
    %133 = arith.truncf %132 : vector<8x8xf32> to vector<8x8xbf16>
    %c24 = arith.constant 24 : index
    %c0_62 = arith.constant 0 : index
    %134 = vector.load %arg5[%c24, %c0_62] : memref<32x32xbf16, #tpu.memory_space<vmem>>, vector<8x32xbf16>
    %cst_63 = arith.constant dense<0.000000e+00> : vector<8x32xf32>
    %135 = tpu.matmul %133, %134, %cst_63 {dimension_numbers = #tpu.dot_dimension_numbers<[1], [0], [0], [1], [0, 0, 1, 1], [], []>} : vector<8x8xbf16>, vector<8x32xbf16>, vector<8x32xf32> -> vector<8x32xf32>
    %136 = arith.addf %130, %135 : vector<8x32xf32>
    %c0_64 = arith.constant 0 : index
    %c0_65 = arith.constant 0 : index
    %137 = vector.load %arg6[%c0_64, %c0_65] : memref<1x32xf32, #tpu.memory_space<vmem>>, vector<1x32xf32>
    %138 = vector.broadcast %137 : vector<1x32xf32> to vector<8x32xf32>
    %139 = arith.addf %136, %138 : vector<8x32xf32>
    %140 = arith.addf %139, %1 : vector<8x32xf32>
    %c0_66 = arith.constant 0 : index
    %c0_67 = arith.constant 0 : index
    %141 = vector.load %arg7[%c0_66, %c0_67] : memref<1x32xf32, #tpu.memory_space<vmem>>, vector<1x32xf32>
    %c0_68 = arith.constant 0 : index
    %c0_69 = arith.constant 0 : index
    %142 = vector.load %arg8[%c0_68, %c0_69] : memref<1x32xf32, #tpu.memory_space<vmem>>, vector<1x32xf32>
    %cst_70 = arith.constant dense<0.000000e+00> : vector<8xf32>
    %143 = vector.multi_reduction <add>, %140, %cst_70 [1] : vector<8x32xf32> to vector<8xf32>
    %144 = vector.shape_cast %143 : vector<8xf32> to vector<8x1xf32>
    %cst_71 = arith.constant 3.200000e+01 : f32
    %145 = vector.broadcast %cst_71 : f32 to vector<8x1xf32>
    %146 = arith.divf %144, %145 : vector<8x1xf32>
    %147 = vector.broadcast %146 : vector<8x1xf32> to vector<8x32xf32>
    %148 = arith.subf %140, %147 : vector<8x32xf32>
    %149 = arith.mulf %148, %148 : vector<8x32xf32>
    %cst_72 = arith.constant dense<0.000000e+00> : vector<8xf32>
    %150 = vector.multi_reduction <add>, %149, %cst_72 [1] : vector<8x32xf32> to vector<8xf32>
    %151 = vector.shape_cast %150 : vector<8xf32> to vector<8x1xf32>
    %cst_73 = arith.constant 3.200000e+01 : f32
    %152 = vector.broadcast %cst_73 : f32 to vector<8x1xf32>
    %153 = arith.divf %151, %152 : vector<8x1xf32>
    %154 = vector.broadcast %146 : vector<8x1xf32> to vector<8x32xf32>
    %155 = arith.subf %140, %154 : vector<8x32xf32>
    %cst_74 = arith.constant 9.99999974E-6 : f32
    %156 = vector.broadcast %cst_74 : f32 to vector<8x1xf32>
    %157 = arith.addf %153, %156 : vector<8x1xf32>
    %158 = math.rsqrt %157 : vector<8x1xf32>
    %159 = vector.broadcast %158 : vector<8x1xf32> to vector<8x32xf32>
    %160 = arith.mulf %155, %159 : vector<8x32xf32>
    %161 = vector.broadcast %141 : vector<1x32xf32> to vector<8x32xf32>
    %162 = arith.mulf %160, %161 : vector<8x32xf32>
    %163 = vector.broadcast %142 : vector<1x32xf32> to vector<8x32xf32>
    %164 = arith.addf %162, %163 : vector<8x32xf32>
    %165 = arith.truncf %164 : vector<8x32xf32> to vector<8x32xbf16>
    %c0_75 = arith.constant 0 : index
    %c0_76 = arith.constant 0 : index
    %166 = vector.load %arg9[%c0_75, %c0_76] : memref<32x64xbf16, #tpu.memory_space<vmem>>, vector<32x64xbf16>
    %cst_77 = arith.constant dense<0.000000e+00> : vector<8x64xf32>
    %167 = tpu.matmul %165, %166, %cst_77 {dimension_numbers = #tpu.dot_dimension_numbers<[1], [0], [0], [1], [0, 0, 1, 1], [], []>} : vector<8x32xbf16>, vector<32x64xbf16>, vector<8x64xf32> -> vector<8x64xf32>
    %c0_78 = arith.constant 0 : index
    %c0_79 = arith.constant 0 : index
    %168 = vector.load %arg10[%c0_78, %c0_79] : memref<1x64xf32, #tpu.memory_space<vmem>>, vector<1x64xf32>
    %169 = vector.broadcast %168 : vector<1x64xf32> to vector<8x64xf32>
    %170 = arith.addf %167, %169 : vector<8x64xf32>
    %cst_80 = arith.constant 0.000000e+00 : f32
    %171 = vector.broadcast %cst_80 : f32 to vector<8x64xf32>
    %172 = arith.maximumf %170, %171 : vector<8x64xf32>
    %173 = arith.truncf %172 : vector<8x64xf32> to vector<8x64xbf16>
    %c0_81 = arith.constant 0 : index
    %c0_82 = arith.constant 0 : index
    %174 = vector.load %arg11[%c0_81, %c0_82] : memref<64x32xbf16, #tpu.memory_space<vmem>>, vector<64x32xbf16>
    %cst_83 = arith.constant dense<0.000000e+00> : vector<8x32xf32>
    %175 = tpu.matmul %173, %174, %cst_83 {dimension_numbers = #tpu.dot_dimension_numbers<[1], [0], [0], [1], [0, 0, 1, 1], [], []>} : vector<8x64xbf16>, vector<64x32xbf16>, vector<8x32xf32> -> vector<8x32xf32>
    %c0_84 = arith.constant 0 : index
    %c0_85 = arith.constant 0 : index
    %176 = vector.load %arg12[%c0_84, %c0_85] : memref<1x32xf32, #tpu.memory_space<vmem>>, vector<1x32xf32>
    %177 = vector.broadcast %176 : vector<1x32xf32> to vector<8x32xf32>
    %178 = arith.addf %175, %177 : vector<8x32xf32>
    %179 = arith.addf %178, %164 : vector<8x32xf32>
    %c0_86 = arith.constant 0 : index
    %c0_87 = arith.constant 0 : index
    %180 = vector.load %arg13[%c0_86, %c0_87] : memref<1x32xf32, #tpu.memory_space<vmem>>, vector<1x32xf32>
    %c0_88 = arith.constant 0 : index
    %c0_89 = arith.constant 0 : index
    %181 = vector.load %arg14[%c0_88, %c0_89] : memref<1x32xf32, #tpu.memory_space<vmem>>, vector<1x32xf32>
    %cst_90 = arith.constant dense<0.000000e+00> : vector<8xf32>
    %182 = vector.multi_reduction <add>, %179, %cst_90 [1] : vector<8x32xf32> to vector<8xf32>
    %183 = vector.shape_cast %182 : vector<8xf32> to vector<8x1xf32>
    %cst_91 = arith.constant 3.200000e+01 : f32
    %184 = vector.broadcast %cst_91 : f32 to vector<8x1xf32>
    %185 = arith.divf %183, %184 : vector<8x1xf32>
    %186 = vector.broadcast %185 : vector<8x1xf32> to vector<8x32xf32>
    %187 = arith.subf %179, %186 : vector<8x32xf32>
    %188 = arith.mulf %187, %187 : vector<8x32xf32>
    %cst_92 = arith.constant dense<0.000000e+00> : vector<8xf32>
    %189 = vector.multi_reduction <add>, %188, %cst_92 [1] : vector<8x32xf32> to vector<8xf32>
    %190 = vector.shape_cast %189 : vector<8xf32> to vector<8x1xf32>
    %cst_93 = arith.constant 3.200000e+01 : f32
    %191 = vector.broadcast %cst_93 : f32 to vector<8x1xf32>
    %192 = arith.divf %190, %191 : vector<8x1xf32>
    %193 = vector.broadcast %185 : vector<8x1xf32> to vector<8x32xf32>
    %194 = arith.subf %179, %193 : vector<8x32xf32>
    %cst_94 = arith.constant 9.99999974E-6 : f32
    %195 = vector.broadcast %cst_94 : f32 to vector<8x1xf32>
    %196 = arith.addf %192, %195 : vector<8x1xf32>
    %197 = math.rsqrt %196 : vector<8x1xf32>
    %198 = vector.broadcast %197 : vector<8x1xf32> to vector<8x32xf32>
    %199 = arith.mulf %194, %198 : vector<8x32xf32>
    %200 = vector.broadcast %180 : vector<1x32xf32> to vector<8x32xf32>
    %201 = arith.mulf %199, %200 : vector<8x32xf32>
    %202 = vector.broadcast %181 : vector<1x32xf32> to vector<8x32xf32>
    %203 = arith.addf %201, %202 : vector<8x32xf32>
    %c0_95 = arith.constant 0 : index
    %c0_96 = arith.constant 0 : index
    %c0_97 = arith.constant 0 : index
    %204 = vector.load %arg15[%c0_95, %c0_96, %c0_97] : memref<1x8x32xf32, #tpu.memory_space<vmem>>, vector<1x8x32xf32>
    %205 = vector.shape_cast %204 : vector<1x8x32xf32> to vector<8x32xf32>
    %206 = vector.shape_cast %203 : vector<8x32xf32> to vector<1x8x32xf32>
    tpu.vector_store %arg15[%c0_95, %c0_96, %c0_97], %206 {strides = array<i32>} : memref<1x8x32xf32, #tpu.memory_space<vmem>>, vector<1x8x32xf32>,
    return
  }
  func.func @transform_0(%arg0: i32, %arg1: i32) -> (i32, i32, i32) {
    %c0_i32 = arith.constant 0 : i32
    %c0_i32_0 = arith.constant 0 : i32
    return %arg0, %arg1, %c0_i32 : i32, i32, i32
  }
  func.func @transform_1(%arg0: i32, %arg1: i32) -> (i32, i32) {
    %c0_i32 = arith.constant 0 : i32
    %c0_i32_0 = arith.constant 0 : i32
    %c0_i32_1 = arith.constant 0 : i32
    return %c0_i32, %c0_i32_0 : i32, i32
  }
  func.func @transform_2(%arg0: i32, %arg1: i32) -> (i32, i32) {
    %c0_i32 = arith.constant 0 : i32
    %c0_i32_0 = arith.constant 0 : i32
    %c0_i32_1 = arith.constant 0 : i32
    return %c0_i32, %c0_i32_0 : i32, i32
  }
  func.func @transform_3(%arg0: i32, %arg1: i32) -> (i32, i32) {
    %c0_i32 = arith.constant 0 : i32
    %c0_i32_0 = arith.constant 0 : i32
    %c0_i32_1 = arith.constant 0 : i32
    return %c0_i32, %c0_i32_0 : i32, i32
  }
  func.func @transform_4(%arg0: i32, %arg1: i32) -> (i32, i32) {
    %c0_i32 = arith.constant 0 : i32
    %c0_i32_0 = arith.constant 0 : i32
    %c0_i32_1 = arith.constant 0 : i32
    return %c0_i32, %c0_i32_0 : i32, i32
  }
  func.func @transform_5(%arg0: i32, %arg1: i32) -> (i32, i32) {
    %c0_i32 = arith.constant 0 : i32
    %c0_i32_0 = arith.constant 0 : i32
    %c0_i32_1 = arith.constant 0 : i32
    return %c0_i32, %c0_i32_0 : i32, i32
  }
  func.func @transform_6(%arg0: i32, %arg1: i32) -> (i32, i32) {
    %c0_i32 = arith.constant 0 : i32
    %c0_i32_0 = arith.constant 0 : i32
    %c0_i32_1 = arith.constant 0 : i32
    return %c0_i32, %c0_i32_0 : i32, i32
  }
  func.func @transform_7(%arg0: i32, %arg1: i32) -> (i32, i32) {
    %c0_i32 = arith.constant 0 : i32
    %c0_i32_0 = arith.constant 0 : i32
    %c0_i32_1 = arith.constant 0 : i32
    return %c0_i32, %c0_i32_0 : i32, i32
  }
  func.func @transform_8(%arg0: i32, %arg1: i32) -> (i32, i32) {
    %c0_i32 = arith.constant 0 : i32
    %c0_i32_0 = arith.constant 0 : i32
    %c0_i32_1 = arith.constant 0 : i32
    return %c0_i32, %c0_i32_0 : i32, i32
  }
  func.func @transform_9(%arg0: i32, %arg1: i32) -> (i32, i32) {
    %c0_i32 = arith.constant 0 : i32
    %c0_i32_0 = arith.constant 0 : i32
    %c0_i32_1 = arith.constant 0 : i32
    return %c0_i32, %c0_i32_0 : i32, i32
  }
  func.func @transform_10(%arg0: i32, %arg1: i32) -> (i32, i32) {
    %c0_i32 = arith.constant 0 : i32
    %c0_i32_0 = arith.constant 0 : i32
    %c0_i32_1 = arith.constant 0 : i32
    return %c0_i32, %c0_i32_0 : i32, i32
  }
  func.func @transform_11(%arg0: i32, %arg1: i32) -> (i32, i32) {
    %c0_i32 = arith.constant 0 : i32
    %c0_i32_0 = arith.constant 0 : i32
    %c0_i32_1 = arith.constant 0 : i32
    return %c0_i32, %c0_i32_0 : i32, i32
  }
  func.func @transform_12(%arg0: i32, %arg1: i32) -> (i32, i32) {
    %c0_i32 = arith.constant 0 : i32
    %c0_i32_0 = arith.constant 0 : i32
    %c0_i32_1 = arith.constant 0 : i32
    return %c0_i32, %c0_i32_0 : i32, i32
  }
  func.func @transform_13(%arg0: i32, %arg1: i32) -> (i32, i32, i32) {
    %c0_i32 = arith.constant 0 : i32
    %c0_i32_0 = arith.constant 0 : i32
    return %arg0, %arg1, %c0_i32 : i32, i32, i32
  }
}

</mosaic_0001>

<llo_original>
// kernel: tpu_custom_call.1
$region0: #{tpu_custom_call.1}
  #allocation0 [shape = 'u32[]', space=smem, size = 0x4, offset = 0x4, fixed_abs, tag = 'smem constant byte address 0x4 - core index']
  #allocation1 [shape = 'u32[144,128]{1,0:T(1,128)}', space=vmem, size = 0x12000, scoped, tag = 'internal scratch']
  #allocation2 [shape = 'bf16[4,8,8]{2,1,0:T(8,128)(2,1)}', space=vmem, size = 0x2000, scoped, tag = 'scratch operand']
  #allocation3 [shape = 'bf16[2,4,8,8]{3,2,1,0:T(8,128)(2,1)}', space=vmem, size = 0x4000, scoped, tag = 'scratch operand']
  #allocation4 [shape = 'bf16[2,4,8,8]{3,2,1,0:T(8,128)(2,1)}', space=vmem, size = 0x4000, scoped, tag = 'scratch operand']
  %s0 = inlined_call_operand.vmem [shape: f32[2,16,32], index: 0, kind: input, shape index: {}]
  %s1 = inlined_call_operand.vmem [shape: bf16[32,96], index: 1, kind: input, shape index: {}]
  %s2 = inlined_call_operand.hbm [shape: f32[1,96], index: 2, kind: input, shape index: {}]
  %s3 = inlined_call_operand.hbm [shape: bf16[32,32], index: 3, kind: input, shape index: {}]
  %s4 = inlined_call_operand.hbm [shape: f32[1,32], index: 4, kind: input, shape index: {}]
  %s5 = inlined_call_operand.hbm [shape: f32[1,32], index: 5, kind: input, shape index: {}]
  %s6 = inlined_call_operand.hbm [shape: f32[1,32], index: 6, kind: input, shape index: {}]
  %s7 = inlined_call_operand.hbm [shape: bf16[32,64], index: 7, kind: input, shape index: {}]
  %s8 = inlined_call_operand.hbm [shape: f32[1,64], index: 8, kind: input, shape index: {}]
  %s9 = inlined_call_operand.vmem [shape: bf16[64,32], index: 9, kind: input, shape index: {}]
  %s10 = inlined_call_operand.vmem [shape: f32[1,32], index: 10, kind: input, shape index: {}]
  %s11 = inlined_call_operand.vmem [shape: f32[1,32], index: 11, kind: input, shape index: {}]
  %s12 = inlined_call_operand.vmem [shape: f32[1,32], index: 12, kind: input, shape index: {}]
  %s13 = inlined_call_operand.hbm [shape: f32[2,16,32], index: 13, kind: output, shape index: {}]
  %s14 = sld [smem:[#allocation0]]
  $region120: #{tpu_custom_call.1} parent=0
    _
  %s16 = ssub.s32 1, %s14
  %s17 = scalar_select 0, %s16, %s14
  $region1: #{tpu_custom_call.1} parent=0
    #allocation5 [shape = 'u8[512]{0}', space=vmem, size = 0x400, scoped, tag = 'input window, operand 2, single buffered']
    #allocation6 [shape = 's32[2]{0}', space=sflag, size = 0x8, scoped, tag = 'scoped memory for tpu_custom_call.1']
    #allocation7 [shape = 's32[2]{0}', space=sflag, size = 0x8, scoped, tag = 'scoped memory for tpu_custom_call.1']
    #allocation8 [shape = 'u8[8192]{0}', space=vmem, size = 0x2000, scoped, tag = 'input window, operand 3, single buffered']
    #allocation9 [shape = 's32[1]{0}', space=sflag, size = 0x4, scoped, tag = 'scoped memory for tpu_custom_call.1']
    #allocation10 [shape = 'u8[512]{0}', space=vmem, size = 0x400, scoped, tag = 'input window, operand 4, single buffered']
    #allocation11 [shape = 'u8[512]{0}', space=vmem, size = 0x400, scoped, tag = 'input window, operand 5, single buffered']
    #allocation12 [shape = 's32[1]{0}', space=sflag, size = 0x4, scoped, tag = 'scoped memory for tpu_custom_call.1']
    #allocation13 [shape = 'u8[512]{0}', space=vmem, size = 0x400, scoped, tag = 'input window, operand 6, single buffered']
    #allocation14 [shape = 'u8[8192]{0}', space=vmem, size = 0x2000, scoped, tag = 'input window, operand 7, single buffered']
    #allocation15 [shape = 's32[1]{0}', space=sflag, size = 0x4, scoped, tag = 'scoped memory for tpu_custom_call.1']
    #allocation16 [shape = 'u8[512]{0}', space=vmem, size = 0x400, scoped, tag = 'input window, operand 8, single buffered']
    #allocation17 [shape = 'u8[8192]{0}', space=vmem, size = 0x2000, scoped, tag = 'output window, operand 0']
    %18 = vsyncpa [#allocation6], 0
    %19 = vsyncpa [#allocation9], 0
    %20 = vsyncpa [#allocation12], 0
    %21 = vsyncpa [#allocation15], 0
    %22 = vsyncpa [#allocation7], 0
    %s23 = scalar_lea.sflag [#allocation7], 1
    %24 = vsyncpa %s23, 0
    loop: start=0, step=1, limit=6
    $region2: #{tpu_custom_call.1} parent=1 // loop_pre_header
      _
    $region3: #{tpu_custom_call.1} parent=1 // loop_header
      %s26 = sphi 0, %s30
      %p27 = scmp.ge.s32.totalorder %s26, 6
      %s33 = sphi 0, %s45
      %s34 = sphi 0, %s41
      %s35 = sphi 0, %s33
      %s36 = sphi 0, %s34
      %s37 = sphi 0, %s35
      %s38 = sphi 0, %s36
      %s50 = sphi 0, %s52
      %s53 = sphi 0, %s50
      %s54 = sphi 0, %s53
      %s70 = sphi 0, %s54
      %s74 = sphi 0, %s74
      %s76 = sphi 0, %s74
      %s77 = sphi 0, %s76
      %s91 = sphi 0, %s77
      %s95 = sphi 0, %s95
      %s97 = sphi 0, %s95
      %s98 = sphi 0, %s97
      %s112 = sphi 0, %s98
      %s116 = sphi 0, %s116
      %s118 = sphi 0, %s116
      %s119 = sphi 0, %s118
      %s133 = sphi 0, %s119
      %s137 = sphi 0, %s137
      %s139 = sphi 0, %s137
      %s140 = sphi 0, %s139
      %s154 = sphi 0, %s140
      %s158 = sphi 0, %s158
      %s160 = sphi 0, %s158
      %s161 = sphi 0, %s160
      %s175 = sphi 0, %s161
      %s179 = sphi 0, %s179
      %s181 = sphi 0, %s179
      %s182 = sphi 0, %s181
      %s196 = sphi 0, %s182
      %s200 = sphi 0, %s200
      %s202 = sphi 0, %s200
      %s203 = sphi 0, %s202
      %s217 = sphi 0, %s203
      %s221 = sphi 0, %s221
      %s223 = sphi 0, %s221
      %s224 = sphi 0, %s223
      %s238 = sphi 0, %s224
      %s242 = sphi 0, %s242
      %s244 = sphi 0, %s242
      %s245 = sphi 0, %s244
      %s259 = sphi 0, %s245
      %s263 = sphi 0, %s263
      %s265 = sphi 0, %s263
      %s266 = sphi 0, %s265
      %s280 = sphi 0, %s266
      %s284 = sphi 0, %s284
      %s286 = sphi 0, %s284
      %s287 = sphi 0, %s286
      %s301 = sphi 0, %s287
      %s305 = sphi 0, %s305
      %s307 = sphi 0, %s305
      %s308 = sphi 0, %s307
      %s322 = sphi 0, %s308
      %s330 = sphi 0, %s332
      %s333 = sphi 0, %s330
      %s334 = sphi 0, %s333
      %s350 = sphi 0, %s334
    $region4: #{tpu_custom_call.1} parent=1 // loop_header_branch
      %29 = sbr.rel (%p27) target = $region8
    $region5: #{tpu_custom_call.1} parent=1 // loop_body
      %s31 = ssub.s32 %s26, 1
      %s32 = ssub.s32 %s26, 2
      %s39 = sadd.s32 1, %s34
      %p40 = scmp.ge.s32.totalorder %s39, 2
      %s41 = scalar_select %p40, 0, %s39
      %s42 = sadd.s32 1, %s33
      %s43 = scalar_select %p40, %s42, %s33
      %p44 = scmp.ge.s32.totalorder %s43, 2
      %s45 = scalar_select %p44, 0, %s43
      %s46 = ssub.s32 %s33, %s45
      %s47 = ssub.s32 %s34, %s41
      %s48 = sor.u32 %s46, %s47
      %p49 = scmp.eq.s32.totalorder %s48, 0
      %s51 = sadd.s32 %s50, 1
      %s52 = scalar_select %p49, %s50, %s51
      %p55 = pneg %p49
      %p56 = scmp.eq.s32.totalorder %s26, 3
      %p57 = por %p55, %p56
      %p58 = scmp.ne.s32.totalorder %s50, %s53
      %p59 = scmp.eq.s32.totalorder %s26, 0
      %p60 = por %p58, %p59
      %p61 = scmp.ne.s32.totalorder %s50, %s53
      %p62 = scmp.eq.s32.totalorder %s31, 3
      %p63 = por %p61, %p62
      %p64 = scmp.ne.s32.totalorder %s53, %s54
      %p65 = scmp.eq.s32.totalorder %s31, 0
      %p66 = por %p64, %p65
      %p67 = scmp.ne.s32.totalorder %s53, %s54
      %p68 = scmp.eq.s32.totalorder %s32, 3
      %p69 = por %p67, %p68
      %p71 = scmp.ne.s32.totalorder %s54, %s70
      %p72 = scmp.eq.s32.totalorder %s32, 0
      %p73 = por %p71, %p72
      %s75 = sadd.s32 %s74, 1
      %p78 = scmp.eq.s32.totalorder %s26, 3
      %p79 = scmp.ne.s32.totalorder %s74, %s76
      %p80 = scmp.eq.s32.totalorder %s26, 0
      %p81 = por %p79, %p80
      %p82 = scmp.ne.s32.totalorder %s74, %s76
      %p83 = scmp.eq.s32.totalorder %s31, 3
      %p84 = por %p82, %p83
      %p85 = scmp.ne.s32.totalorder %s76, %s77
      %p86 = scmp.eq.s32.totalorder %s31, 0
      %p87 = por %p85, %p86
      %p88 = scmp.ne.s32.totalorder %s76, %s77
      %p89 = scmp.eq.s32.totalorder %s32, 3
      %p90 = por %p88, %p89
      %p92 = scmp.ne.s32.totalorder %s77, %s91
      %p93 = scmp.eq.s32.totalorder %s32, 0
      %p94 = por %p92, %p93
      %s96 = sadd.s32 %s95, 1
      %p99 = scmp.eq.s32.totalorder %s26, 3
      %p100 = scmp.ne.s32.totalorder %s95, %s97
      %p101 = scmp.eq.s32.totalorder %s26, 0
      %p102 = por %p100, %p101
      %p103 = scmp.ne.s32.totalorder %s95, %s97
      %p104 = scmp.eq.s32.totalorder %s31, 3
      %p105 = por %p103, %p104
      %p106 = scmp.ne.s32.totalorder %s97, %s98
      %p107 = scmp.eq.s32.totalorder %s31, 0
      %p108 = por %p106, %p107
      %p109 = scmp.ne.s32.totalorder %s97, %s98
      %p110 = scmp.eq.s32.totalorder %s32, 3
      %p111 = por %p109, %p110
      %p113 = scmp.ne.s32.totalorder %s98, %s112
      %p114 = scmp.eq.s32.totalorder %s32, 0
      %p115 = por %p113, %p114
      %s117 = sadd.s32 %s116, 1
      %p120 = scmp.eq.s32.totalorder %s26, 3
      %p121 = scmp.ne.s32.totalorder %s116, %s118
      %p122 = scmp.eq.s32.totalorder %s26, 0
      %p123 = por %p121, %p122
      %p124 = scmp.ne.s32.totalorder %s116, %s118
      %p125 = scmp.eq.s32.totalorder %s31, 3
      %p126 = por %p124, %p125
      %p127 = scmp.ne.s32.totalorder %s118, %s119
      %p128 = scmp.eq.s32.totalorder %s31, 0
      %p129 = por %p127, %p128
      %p130 = scmp.ne.s32.totalorder %s118, %s119
      %p131 = scmp.eq.s32.totalorder %s32, 3
      %p132 = por %p130, %p131
      %p134 = scmp.ne.s32.totalorder %s119, %s133
      %p135 = scmp.eq.s32.totalorder %s32, 0
      %p136 = por %p134, %p135
      %s138 = sadd.s32 %s137, 1
      %p141 = scmp.eq.s32.totalorder %s26, 3
      %p142 = scmp.ne.s32.totalorder %s137, %s139
      %p143 = scmp.eq.s32.totalorder %s26, 0
      %p144 = por %p142, %p143
      %p145 = scmp.ne.s32.totalorder %s137, %s139
      %p146 = scmp.eq.s32.totalorder %s31, 3
      %p147 = por %p145, %p146
      %p148 = scmp.ne.s32.totalorder %s139, %s140
      %p149 = scmp.eq.s32.totalorder %s31, 0
      %p150 = por %p148, %p149
      %p151 = scmp.ne.s32.totalorder %s139, %s140
      %p152 = scmp.eq.s32.totalorder %s32, 3
      %p153 = por %p151, %p152
      %p155 = scmp.ne.s32.totalorder %s140, %s154
      %p156 = scmp.eq.s32.totalorder %s32, 0
      %p157 = por %p155, %p156
      %s159 = sadd.s32 %s158, 1
      %p162 = scmp.eq.s32.totalorder %s26, 3
      %p163 = scmp.ne.s32.totalorder %s158, %s160
      %p164 = scmp.eq.s32.totalorder %s26, 0
      %p165 = por %p163, %p164
      %p166 = scmp.ne.s32.totalorder %s158, %s160
      %p167 = scmp.eq.s32.totalorder %s31, 3
      %p168 = por %p166, %p167
      %p169 = scmp.ne.s32.totalorder %s160, %s161
      %p170 = scmp.eq.s32.totalorder %s31, 0
      %p171 = por %p169, %p170
      %p172 = scmp.ne.s32.totalorder %s160, %s161
      %p173 = scmp.eq.s32.totalorder %s32, 3
      %p174 = por %p172, %p173
      %p176 = scmp.ne.s32.totalorder %s161, %s175
      %p177 = scmp.eq.s32.totalorder %s32, 0
      %p178 = por %p176, %p177
      %s180 = sadd.s32 %s179, 1
      %p183 = scmp.eq.s32.totalorder %s26, 3
      %p184 = scmp.ne.s32.totalorder %s179, %s181
      %p185 = scmp.eq.s32.totalorder %s26, 0
      %p186 = por %p184, %p185
      %p187 = scmp.ne.s32.totalorder %s179, %s181
      %p188 = scmp.eq.s32.totalorder %s31, 3
      %p189 = por %p187, %p188
      %p190 = scmp.ne.s32.totalorder %s181, %s182
      %p191 = scmp.eq.s32.totalorder %s31, 0
      %p192 = por %p190, %p191
      %p193 = scmp.ne.s32.totalorder %s181, %s182
      %p194 = scmp.eq.s32.totalorder %s32, 3
      %p195 = por %p193, %p194
      %p197 = scmp.ne.s32.totalorder %s182, %s196
      %p198 = scmp.eq.s32.totalorder %s32, 0
      %p199 = por %p197, %p198
      %s201 = sadd.s32 %s200, 1
      %p204 = scmp.eq.s32.totalorder %s26, 3
      %p205 = scmp.ne.s32.totalorder %s200, %s202
      %p206 = scmp.eq.s32.totalorder %s26, 0
      %p207 = por %p205, %p206
      %p208 = scmp.ne.s32.totalorder %s200, %s202
      %p209 = scmp.eq.s32.totalorder %s31, 3
      %p210 = por %p208, %p209
      %p211 = scmp.ne.s32.totalorder %s202, %s203
      %p212 = scmp.eq.s32.totalorder %s31, 0
      %p213 = por %p211, %p212
      %p214 = scmp.ne.s32.totalorder %s202, %s203
      %p215 = scmp.eq.s32.totalorder %s32, 3
      %p216 = por %p214, %p215
      %p218 = scmp.ne.s32.totalorder %s203, %s217
      %p219 = scmp.eq.s32.totalorder %s32, 0
      %p220 = por %p218, %p219
      %s222 = sadd.s32 %s221, 1
      %p225 = scmp.eq.s32.totalorder %s26, 3
      %p226 = scmp.ne.s32.totalorder %s221, %s223
      %p227 = scmp.eq.s32.totalorder %s26, 0
      %p228 = por %p226, %p227
      %p229 = scmp.ne.s32.totalorder %s221, %s223
      %p230 = scmp.eq.s32.totalorder %s31, 3
      %p231 = por %p229, %p230
      %p232 = scmp.ne.s32.totalorder %s223, %s224
      %p233 = scmp.eq.s32.totalorder %s31, 0
      %p234 = por %p232, %p233
      %p235 = scmp.ne.s32.totalorder %s223, %s224
      %p236 = scmp.eq.s32.totalorder %s32, 3
      %p237 = por %p235, %p236
      %p239 = scmp.ne.s32.totalorder %s224, %s238
      %p240 = scmp.eq.s32.totalorder %s32, 0
      %p241 = por %p239, %p240
      %s243 = sadd.s32 %s242, 1
      %p246 = scmp.eq.s32.totalorder %s26, 3
      %p247 = scmp.ne.s32.totalorder %s242, %s244
      %p248 = scmp.eq.s32.totalorder %s26, 0
      %p249 = por %p247, %p248
      %p250 = scmp.ne.s32.totalorder %s242, %s244
      %p251 = scmp.eq.s32.totalorder %s31, 3
      %p252 = por %p250, %p251
      %p253 = scmp.ne.s32.totalorder %s244, %s245
      %p254 = scmp.eq.s32.totalorder %s31, 0
      %p255 = por %p253, %p254
      %p256 = scmp.ne.s32.totalorder %s244, %s245
      %p257 = scmp.eq.s32.totalorder %s32, 3
      %p258 = por %p256, %p257
      %p260 = scmp.ne.s32.totalorder %s245, %s259
      %p261 = scmp.eq.s32.totalorder %s32, 0
      %p262 = por %p260, %p261
      %s264 = sadd.s32 %s263, 1
      %p267 = scmp.eq.s32.totalorder %s26, 3
      %p268 = scmp.ne.s32.totalorder %s263, %s265
      %p269 = scmp.eq.s32.totalorder %s26, 0
      %p270 = por %p268, %p269
      %p271 = scmp.ne.s32.totalorder %s263, %s265
      %p272 = scmp.eq.s32.totalorder %s31, 3
      %p273 = por %p271, %p272
      %p274 = scmp.ne.s32.totalorder %s265, %s266
      %p275 = scmp.eq.s32.totalorder %s31, 0
      %p276 = por %p274, %p275
      %p277 = scmp.ne.s32.totalorder %s265, %s266
      %p278 = scmp.eq.s32.totalorder %s32, 3
      %p279 = por %p277, %p278
      %p281 = scmp.ne.s32.totalorder %s266, %s280
      %p282 = scmp.eq.s32.totalorder %s32, 0
      %p283 = por %p281, %p282
      %s285 = sadd.s32 %s284, 1
      %p288 = scmp.eq.s32.totalorder %s26, 3
      %p289 = scmp.ne.s32.totalorder %s284, %s286
      %p290 = scmp.eq.s32.totalorder %s26, 0
      %p291 = por %p289, %p290
      %p292 = scmp.ne.s32.totalorder %s284, %s286
      %p293 = scmp.eq.s32.totalorder %s31, 3
      %p294 = por %p292, %p293
      %p295 = scmp.ne.s32.totalorder %s286, %s287
      %p296 = scmp.eq.s32.totalorder %s31, 0
      %p297 = por %p295, %p296
      %p298 = scmp.ne.s32.totalorder %s286, %s287
      %p299 = scmp.eq.s32.totalorder %s32, 3
      %p300 = por %p298, %p299
      %p302 = scmp.ne.s32.totalorder %s287, %s301
      %p303 = scmp.eq.s32.totalorder %s32, 0
      %p304 = por %p302, %p303
      %s306 = sadd.s32 %s305, 1
      %p309 = scmp.eq.s32.totalorder %s26, 3
      %p310 = scmp.ne.s32.totalorder %s305, %s307
      %p311 = scmp.eq.s32.totalorder %s26, 0
      %p312 = por %p310, %p311
      %p313 = scmp.ne.s32.totalorder %s305, %s307
      %p314 = scmp.eq.s32.totalorder %s31, 3
      %p315 = por %p313, %p314
      %p316 = scmp.ne.s32.totalorder %s307, %s308
      %p317 = scmp.eq.s32.totalorder %s31, 0
      %p318 = por %p316, %p317
      %p319 = scmp.ne.s32.totalorder %s307, %s308
      %p320 = scmp.eq.s32.totalorder %s32, 3
      %p321 = por %p319, %p320
      %p323 = scmp.ne.s32.totalorder %s308, %s322
      %p324 = scmp.eq.s32.totalorder %s32, 0
      %p325 = por %p323, %p324
      %s326 = ssub.s32 %s33, %s45
      %s327 = ssub.s32 %s34, %s41
      %s328 = sor.u32 %s326, %s327
      %p329 = scmp.eq.s32.totalorder %s328, 0
      %s331 = sadd.s32 %s330, 1
      %s332 = scalar_select %p329, %s330, %s331
      %p335 = pneg %p329
      %p336 = scmp.eq.s32.totalorder %s26, 3
      %p337 = por %p335, %p336
      %p338 = scmp.ne.s32.totalorder %s330, %s333
      %p339 = scmp.eq.s32.totalorder %s26, 0
      %p340 = por %p338, %p339
      %p341 = scmp.ne.s32.totalorder %s330, %s333
      %p342 = scmp.eq.s32.totalorder %s31, 3
      %p343 = por %p341, %p342
      %p344 = scmp.ne.s32.totalorder %s333, %s334
      %p345 = scmp.eq.s32.totalorder %s31, 0
      %p346 = por %p344, %p345
      %p347 = scmp.ne.s32.totalorder %s333, %s334
      %p348 = scmp.eq.s32.totalorder %s32, 3
      %p349 = por %p347, %p348
      %p351 = scmp.ne.s32.totalorder %s334, %s350
      %p352 = scmp.eq.s32.totalorder %s32, 0
      %p353 = por %p351, %p352
      %p354 = scmp.le.s32.totalorder 1, %s26
      %p355 = scmp.lt.s32.totalorder %s26, 5
      %p356 = pnand %p354, %p355
      %p357 = pneg %p356
      // Predicated region
      $region9: #{tpu_custom_call.1} parent=5 // pred_check
        _
      $region10: #{tpu_custom_call.1} parent=5 // pred_check_branch
        %359 = sbr.rel (%p356) target = $region12
      $region11: #{tpu_custom_call.1} parent=5 // pred_region
        %s360 = ssub.s32 %s26, 1
        // Predicated region
        $region13: #{tpu_custom_call.1} parent=11 // pred_check
          %p361 = pneg %p87
        $region14: #{tpu_custom_call.1} parent=11 // pred_check_branch
          %363 = sbr.rel (%p361) target = $region16
        $region15: #{tpu_custom_call.1} parent=11 // pred_region
          _
        $region16: #{tpu_custom_call.1} parent=11 // pred_fallthru
          _
        // Predicated region
        $region17: #{tpu_custom_call.1} parent=11 // pred_check
          %p364 = pneg %p108
        $region18: #{tpu_custom_call.1} parent=11 // pred_check_branch
          %366 = sbr.rel (%p364) target = $region20
        $region19: #{tpu_custom_call.1} parent=11 // pred_region
          %s368 = ssub.s32 16, 16
          %369 = vsyncadd [#allocation6], %s368
          %s371 = sshll.u32 [#allocation5], 4
          %s372 = int_to_ptr.vmem [resolvable:$true] %s371
          %374 = dma.hbm_to_vmem [thread:$0]  %s2, 16, %s372, [#allocation6]
        $region20: #{tpu_custom_call.1} parent=11 // pred_fallthru
          _
        // Predicated region
        $region21: #{tpu_custom_call.1} parent=11 // pred_check
          %p375 = pneg %p129
        $region22: #{tpu_custom_call.1} parent=11 // pred_check_branch
          %377 = sbr.rel (%p375) target = $region24
        $region23: #{tpu_custom_call.1} parent=11 // pred_region
          %s379 = ssub.s32 256, 256
          %380 = vsyncadd [#allocation9], %s379
          %s381 = sshll.u32 [#allocation8], 4
          %s382 = int_to_ptr.vmem [resolvable:$true] %s381
          %387 = dma.hbm_to_vmem [thread:$0]  %s3, 256, %s382, [#allocation9], 64, 64, 4
        $region24: #{tpu_custom_call.1} parent=11 // pred_fallthru
          _
        // Predicated region
        $region25: #{tpu_custom_call.1} parent=11 // pred_check
          %p388 = pneg %p150
        $region26: #{tpu_custom_call.1} parent=11 // pred_check_branch
          %390 = sbr.rel (%p388) target = $region28
        $region27: #{tpu_custom_call.1} parent=11 // pred_region
          %s392 = ssub.s32 16, 16
          %393 = vsyncadd [#allocation9], %s392
          %s395 = sshll.u32 [#allocation10], 4
          %s396 = int_to_ptr.vmem [resolvable:$true] %s395
          %398 = dma.hbm_to_vmem [thread:$0]  %s4, 16, %s396, [#allocation9]
        $region28: #{tpu_custom_call.1} parent=11 // pred_fallthru
          _
        // Predicated region
        $region29: #{tpu_custom_call.1} parent=11 // pred_check
          %p399 = pneg %p171
        $region30: #{tpu_custom_call.1} parent=11 // pred_check_branch
          %401 = sbr.rel (%p399) target = $region32
        $region31: #{tpu_custom_call.1} parent=11 // pred_region
          %s403 = ssub.s32 16, 16
          %404 = vsyncadd [#allocation12], %s403
          %s406 = sshll.u32 [#allocation11], 4
          %s407 = int_to_ptr.vmem [resolvable:$true] %s406
          %409 = dma.hbm_to_vmem [thread:$0]  %s5, 16, %s407, [#allocation12]
        $region32: #{tpu_custom_call.1} parent=11 // pred_fallthru
          _
        // Predicated region
        $region33: #{tpu_custom_call.1} parent=11 // pred_check
          %p410 = pneg %p192
        $region34: #{tpu_custom_call.1} parent=11 // pred_check_branch
          %412 = sbr.rel (%p410) target = $region36
        $region35: #{tpu_custom_call.1} parent=11 // pred_region
          %s414 = ssub.s32 16, 16
          %415 = vsyncadd [#allocation12], %s414
          %s417 = sshll.u32 [#allocation13], 4
          %s418 = int_to_ptr.vmem [resolvable:$true] %s417
          %420 = dma.hbm_to_vmem [thread:$0]  %s6, 16, %s418, [#allocation12]
        $region36: #{tpu_custom_call.1} parent=11 // pred_fallthru
          _
        // Predicated region
        $region37: #{tpu_custom_call.1} parent=11 // pred_check
          %p421 = pneg %p213
        $region38: #{tpu_custom_call.1} parent=11 // pred_check_branch
          %423 = sbr.rel (%p421) target = $region40
        $region39: #{tpu_custom_call.1} parent=11 // pred_region
          %s425 = ssub.s32 256, 256
          %426 = vsyncadd [#allocation15], %s425
          %s427 = sshll.u32 [#allocation14], 4
          %s428 = int_to_ptr.vmem [resolvable:$true] %s427
          %433 = dma.hbm_to_vmem [thread:$0]  %s7, 256, %s428, [#allocation15], 64, 64, 4
        $region40: #{tpu_custom_call.1} parent=11 // pred_fallthru
          _
        // Predicated region
        $region41: #{tpu_custom_call.1} parent=11 // pred_check
          %p434 = pneg %p234
        $region42: #{tpu_custom_call.1} parent=11 // pred_check_branch
          %436 = sbr.rel (%p434) target = $region44
        $region43: #{tpu_custom_call.1} parent=11 // pred_region
          %s438 = ssub.s32 16, 16
          %439 = vsyncadd [#allocation15], %s438
          %s441 = sshll.u32 [#allocation16], 4
          %s442 = int_to_ptr.vmem [resolvable:$true] %s441
          %444 = dma.hbm_to_vmem [thread:$0]  %s8, 16, %s442, [#allocation15]
        $region44: #{tpu_custom_call.1} parent=11 // pred_fallthru
          _
        // Predicated region
        $region45: #{tpu_custom_call.1} parent=11 // pred_check
          %p445 = pneg %p255
        $region46: #{tpu_custom_call.1} parent=11 // pred_check_branch
          %447 = sbr.rel (%p445) target = $region48
        $region47: #{tpu_custom_call.1} parent=11 // pred_region
          _
        $region48: #{tpu_custom_call.1} parent=11 // pred_fallthru
          _
        // Predicated region
        $region49: #{tpu_custom_call.1} parent=11 // pred_check
          %p448 = pneg %p276
        $region50: #{tpu_custom_call.1} parent=11 // pred_check_branch
          %450 = sbr.rel (%p448) target = $region52
        $region51: #{tpu_custom_call.1} parent=11 // pred_region
          _
        $region52: #{tpu_custom_call.1} parent=11 // pred_fallthru
          _
        // Predicated region
        $region53: #{tpu_custom_call.1} parent=11 // pred_check
          %p451 = pneg %p297
        $region54: #{tpu_custom_call.1} parent=11 // pred_check_branch
          %453 = sbr.rel (%p451) target = $region56
        $region55: #{tpu_custom_call.1} parent=11 // pred_region
          _
        $region56: #{tpu_custom_call.1} parent=11 // pred_fallthru
          _
        // Predicated region
        $region57: #{tpu_custom_call.1} parent=11 // pred_check
          %p454 = pneg %p318
        $region58: #{tpu_custom_call.1} parent=11 // pred_check_branch
          %456 = sbr.rel (%p454) target = $region60
        $region59: #{tpu_custom_call.1} parent=11 // pred_region
          _
        $region60: #{tpu_custom_call.1} parent=11 // pred_fallthru
          _
      $region12: #{tpu_custom_call.1} parent=5 // pred_fallthru
        _
      %p457 = scmp.lt.s32.totalorder %s26, 4
      // Predicated region
      $region61: #{tpu_custom_call.1} parent=5 // pred_check
        %p458 = pneg %p457
      $region62: #{tpu_custom_call.1} parent=5 // pred_check_branch
        %460 = sbr.rel (%p458) target = $region64
      $region63: #{tpu_custom_call.1} parent=5 // pred_region
        // Predicated region
        $region65: #{tpu_custom_call.1} parent=63 // pred_check
          %p461 = pneg %p60
        $region66: #{tpu_custom_call.1} parent=63 // pred_check_branch
          %463 = sbr.rel (%p461) target = $region68
        $region67: #{tpu_custom_call.1} parent=63 // pred_region
          %p464 = scmp.lt.s32.totalorder %s33, 1
          %s465 = scalar_select %p464, %s33, 1
          %p466 = scmp.lt.s32.totalorder %s34, 1
          %s467 = scalar_select %p466, %s34, 1
          %s468 = smul.addr %s465, 2
          %s469 = sadd.s32 %s467, %s468
          %s470 = smul.addr %s469, 8
          %s471 = scalar_lea.vmem %s0, %s470
        $region68: #{tpu_custom_call.1} parent=63 // pred_fallthru
          _
      $region64: #{tpu_custom_call.1} parent=5 // pred_fallthru
        _
      %p472 = scmp.le.s32.totalorder 1, %s26
      %p473 = scmp.lt.s32.totalorder %s26, 5
      %p474 = pnand %p472, %p473
      %p475 = pneg %p474
      // Predicated region
      $region69: #{tpu_custom_call.1} parent=5 // pred_check
        _
      $region70: #{tpu_custom_call.1} parent=5 // pred_check_branch
        %477 = sbr.rel (%p474) target = $region72
      $region71: #{tpu_custom_call.1} parent=5 // pred_region
        %s478 = ssub.s32 %s26, 1
        // Predicated region
        $region73: #{tpu_custom_call.1} parent=71 // pred_check
          %p479 = pneg %p108
        $region74: #{tpu_custom_call.1} parent=71 // pred_check_branch
          %481 = sbr.rel (%p479) target = $region76
        $region75: #{tpu_custom_call.1} parent=71 // pred_region
          %482 = dma.done [#allocation6], 16
        $region76: #{tpu_custom_call.1} parent=71 // pred_fallthru
          _
        // Predicated region
        $region77: #{tpu_custom_call.1} parent=71 // pred_check
          %p483 = pneg %p129
        $region78: #{tpu_custom_call.1} parent=71 // pred_check_branch
          %485 = sbr.rel (%p483) target = $region80
        $region79: #{tpu_custom_call.1} parent=71 // pred_region
          %486 = dma.done [#allocation9], 256
        $region80: #{tpu_custom_call.1} parent=71 // pred_fallthru
          _
        // Predicated region
        $region81: #{tpu_custom_call.1} parent=71 // pred_check
          %p487 = pneg %p150
        $region82: #{tpu_custom_call.1} parent=71 // pred_check_branch
          %489 = sbr.rel (%p487) target = $region84
        $region83: #{tpu_custom_call.1} parent=71 // pred_region
          %490 = dma.done [#allocation9], 16
        $region84: #{tpu_custom_call.1} parent=71 // pred_fallthru
          _
        // Predicated region
        $region85: #{tpu_custom_call.1} parent=71 // pred_check
          %p491 = pneg %p171
        $region86: #{tpu_custom_call.1} parent=71 // pred_check_branch
          %493 = sbr.rel (%p491) target = $region88
        $region87: #{tpu_custom_call.1} parent=71 // pred_region
          %494 = dma.done [#allocation12], 16
        $region88: #{tpu_custom_call.1} parent=71 // pred_fallthru
          _
        // Predicated region
        $region89: #{tpu_custom_call.1} parent=71 // pred_check
          %p495 = pneg %p192
        $region90: #{tpu_custom_call.1} parent=71 // pred_check_branch
          %497 = sbr.rel (%p495) target = $region92
        $region91: #{tpu_custom_call.1} parent=71 // pred_region
          %498 = dma.done [#allocation12], 16
        $region92: #{tpu_custom_call.1} parent=71 // pred_fallthru
          _
        // Predicated region
        $region93: #{tpu_custom_call.1} parent=71 // pred_check
          %p499 = pneg %p213
        $region94: #{tpu_custom_call.1} parent=71 // pred_check_branch
          %501 = sbr.rel (%p499) target = $region96
        $region95: #{tpu_custom_call.1} parent=71 // pred_region
          %502 = dma.done [#allocation15], 256
        $region96: #{tpu_custom_call.1} parent=71 // pred_fallthru
          _
        // Predicated region
        $region97: #{tpu_custom_call.1} parent=71 // pred_check
          %p503 = pneg %p234
        $region98: #{tpu_custom_call.1} parent=71 // pred_check_branch
          %505 = sbr.rel (%p503) target = $region100
        $region99: #{tpu_custom_call.1} parent=71 // pred_region
          %506 = dma.done [#allocation15], 16
        $region100: #{tpu_custom_call.1} parent=71 // pred_fallthru
          _
        %p507 = scmp.lt.s32.totalorder %s35, 1
        %s508 = scalar_select %p507, %s35, 1
        %p509 = scmp.lt.s32.totalorder %s36, 1
        %s510 = scalar_select %p509, %s36, 1
        %s511 = smul.addr %s508, 2
        %s512 = sadd.s32 %s510, %s511
        %s513 = smul.addr %s512, 8
        %s514 = scalar_lea.vmem %s0, %s513
        %p515 = pneg %p66
        %p516 = pneg %p63
        %p517 = pneg %p87
        %p518 = pneg %p84
        %p519 = pneg %p108
        %p520 = pneg %p105
        %p521 = pneg %p129
        %p522 = pneg %p126
        %p523 = pneg %p150
        %p524 = pneg %p147
        %p525 = pneg %p171
        %p526 = pneg %p168
        %p527 = pneg %p192
        %p528 = pneg %p189
        %p529 = pneg %p213
        %p530 = pneg %p210
        %p531 = pneg %p234
        %p532 = pneg %p231
        %p533 = pneg %p255
        %p534 = pneg %p252
        %p535 = pneg %p276
        %p536 = pneg %p273
        %p537 = pneg %p297
        %p538 = pneg %p294
        %p539 = pneg %p318
        %p540 = pneg %p315
        %p541 = pneg %p346
        %p542 = pneg %p343
        %s543 = sand.u32 %s333, 1
        %s544 = scalar_lea.sflag [#allocation7], %s543
        %s545 = sand.u32 %s333, 1
        %s546 = smul.addr %s545, 8
        %s547 = scalar_lea.vmem [#allocation17], %s546
        %p548 = scmp.lt.s32.totalorder %s35, 1
        %s549 = scalar_select %p548, %s35, 1
        %p550 = scmp.lt.s32.totalorder %s36, 1
        %s551 = scalar_select %p550, %s36, 1
        %s552 = smul.addr %s549, 2
        %s553 = sadd.s32 %s551, %s552
        %s554 = smul.addr %s553, 8
        %s555 = scalar_lea.vmem %s0, %s554
        %v557 = vld [vmem:[%s555] sm:$0xff]
        %v558 = vpack.c.bf16 %v557, %v557
        %v559 = vld [vmem:[%s1] sm:$0xf]
        %v560 = vld [vmem:[%s1 + $0x4] sm:$0xf]
        %v561 = vld [vmem:[%s1 + $0x8] sm:$0xf]
        %v562 = vld [vmem:[%s1 + $0xc] sm:$0xf]
        %v563 = vld [vmem:[#allocation5] sm:$0x1]
        %v565 = vlaneseq
        %v566 = vshrl.u32 %v565, 7
        %v567 = vsub.s32 0, %v566
        %v568 = vrot.slane %v563, %v567
        %v574 = vunpack.c.l.b16 %v559
        %v575 = vunpack.c.l.b16 %v560
        %v576 = vunpack.c.l.b16 %v561
        %v577 = vunpack.c.l.b16 %v562
        %v578 = vpack.c.b16 %v575, %v574
        %v579 = vpack.c.b16 %v577, %v576
        %vm582 = vcmask 261120
        %v584 = vsel %vm582, %v558, 0
        %586 = vmatprep.subr.bf16.mxu0 0
        %587 = vmatpush1.bf16.msra.mxu0 0
        %588 = vmatprep.subr.bf16.mxu0 0
        %589 = vmatpush1.bf16.msra.mxu0 0
        %590 = vmatprep.subr.bf16.mxu0 0
        %591 = vmatpush1.bf16.msra.mxu0 0
        %592 = vmatprep.subr.bf16.mxu0 0
        %593 = vmatpush1.bf16.msra.mxu0 0
        %594 = vmatprep.subr.bf16.mxu0 0
        %595 = vmatpush1.bf16.msra.mxu0 0
        %596 = vmatprep.subr.bf16.mxu0 0
        %597 = vmatpush1.bf16.msra.mxu0 0
        %598 = vmatprep.subr.bf16.mxu0 0
        %599 = vmatpush1.bf16.msra.mxu0 %v579
        %600 = vmatprep.subr.bf16.mxu0 0
        %601 = vmatpush1.bf16.msra.mxu0 %v578
        %602 = vmatprep.subr.bf16.mxu0 0
        %603 = vmatpush2.bf16.msra.mxu0 0
        %604 = vmatprep.subr.bf16.mxu0 0
        %605 = vmatpush2.bf16.msra.mxu0 0
        %606 = vmatprep.subr.bf16.mxu0 0
        %607 = vmatpush2.bf16.msra.mxu0 0
        %608 = vmatprep.subr.bf16.mxu0 0
        %609 = vmatpush2.bf16.msra.mxu0 0
        %610 = vmatprep.subr.bf16.mxu0 0
        %611 = vmatpush2.bf16.msra.mxu0 0
        %612 = vmatprep.subr.bf16.mxu0 0
        %613 = vmatpush2.bf16.msra.mxu0 0
        %614 = vmatprep.subr.bf16.mxu0 0
        %615 = vmatpush2.bf16.msra.mxu0 0
        %616 = vmatprep.subr.bf16.mxu0 0
        %617 = vmatpush2.bf16.msra.mxu0 0
        %618 = vmatprep.mubr.bf16.mxu0 0
        %619 = vmatmul.mubr.bf16.gmra.mxu0 %v584
        %v620 = vpop.f32.mrf.mxu0
        %v621 = vadd.f32 %v568, %v620
        %v622 = vpop.f32.mrf.mxu0
        %v623 = vpop.f32.mrf.mxu0
        %v624 = vpop.f32.mrf.mxu0
        %625 = vdwg.mxu0
        %v626 = vpack.c.bf16 %v621, %v621
        %vm627 = vcmask 60416
        %628 = vst.msk [vmem:[#allocation2] sm:$0xf] %vm627, %v626
        %630 = vrot.lane.b32.xlu0 %v621, 96
        %v631 = vpop.permute.xlu0 %630
        %633 = vxpose.xlu0.b32.start [1/16] %v631, 128
        %634 = vxpose.xlu0.b32.cont [2/16] 0.0, 128
        %635 = vxpose.xlu0.b32.cont [3/16] 0.0, 128
        %636 = vxpose.xlu0.b32.cont [4/16] 0.0, 128
        %637 = vxpose.xlu0.b32.cont [5/16] 0.0, 128
        %638 = vxpose.xlu0.b32.cont [6/16] 0.0, 128
        %639 = vxpose.xlu0.b32.cont [7/16] 0.0, 128
        %640 = vxpose.xlu0.b32.cont [8/16] 0.0, 128
        %641 = vxpose.xlu0.b32.cont [9/16] 0.0, 128
        %642 = vxpose.xlu0.b32.cont [10/16] 0.0, 128
        %643 = vxpose.xlu0.b32.cont [11/16] 0.0, 128
        %644 = vxpose.xlu0.b32.cont [12/16] 0.0, 128
        %645 = vxpose.xlu0.b32.cont [13/16] 0.0, 128
        %646 = vxpose.xlu0.b32.cont [14/16] 0.0, 128
        %647 = vxpose.xlu0.b32.cont [15/16] 0.0, 128
        %648 = vxpose.xlu0.b32.end [16/16] 0.0, 128
        %v649 = vpop.trf.xlu0
        %v650 = vpop.trf.xlu0
        %v651 = vpop.trf.xlu0
        %v652 = vpop.trf.xlu0
        %v653 = vpop.trf.xlu0
        %v654 = vpop.trf.xlu0
        %v655 = vpop.trf.xlu0
        %v656 = vpop.trf.xlu0
        %v657 = vpop.trf.xlu0
        %v658 = vpop.trf.xlu0
        %v659 = vpop.trf.xlu0
        %v660 = vpop.trf.xlu0
        %v661 = vpop.trf.xlu0
        %v662 = vpop.trf.xlu0
        %v663 = vpop.trf.xlu0
        %v664 = vpop.trf.xlu0
        %v665 = vpack.c.bf16 %v649, %v649
        %s666 = smul.u32 %s36, 4
        %s667 = smul.addr %s666, 4
        %s668 = scalar_lea.vmem [#allocation3], %s667
        %669 = vst.msk [vmem:[%s668] sm:$0xf] %vm627, %v665
        %v671 = vunpack.c.l.b16 %v626
        %v672 = vpack.c.b16 %v671, %v671
        %673 = vrot.lane.b32.xlu0 %v672, 64
        %v674 = vpop.permute.xlu0 %673
        %s676 = smul.addr %s666, 4
        %s677 = scalar_lea.vmem [#allocation4], %s676
        %678 = vst.msk [vmem:[%s677] sm:$0xf] %vm627, %v674
        %679 = vrot.lane.b32.xlu0 %v672, 120
        %v680 = vpop.permute.xlu0 %679
        %s682 = scalar_lea.vmem [#allocation2], 4
        %683 = vst.msk [vmem:[%s682] sm:$0xf] %vm627, %v680
        %684 = vrot.lane.b32.xlu0 %v621, 88
        %v685 = vpop.permute.xlu0 %684
        %687 = vxpose.xlu0.b32.start [1/16] %v685, 128
        %688 = vxpose.xlu0.b32.cont [2/16] 0.0, 128
        %689 = vxpose.xlu0.b32.cont [3/16] 0.0, 128
        %690 = vxpose.xlu0.b32.cont [4/16] 0.0, 128
        %691 = vxpose.xlu0.b32.cont [5/16] 0.0, 128
        %692 = vxpose.xlu0.b32.cont [6/16] 0.0, 128
        %693 = vxpose.xlu0.b32.cont [7/16] 0.0, 128
        %694 = vxpose.xlu0.b32.cont [8/16] 0.0, 128
        %695 = vxpose.xlu0.b32.cont [9/16] 0.0, 128
        %696 = vxpose.xlu0.b32.cont [10/16] 0.0, 128
        %697 = vxpose.xlu0.b32.cont [11/16] 0.0, 128
        %698 = vxpose.xlu0.b32.cont [12/16] 0.0, 128
        %699 = vxpose.xlu0.b32.cont [13/16] 0.0, 128
        %700 = vxpose.xlu0.b32.cont [14/16] 0.0, 128
        %701 = vxpose.xlu0.b32.cont [15/16] 0.0, 128
        %702 = vxpose.xlu0.b32.end [16/16] 0.0, 128
        %v703 = vpop.trf.xlu0
        %v704 = vpop.trf.xlu0
        %v705 = vpop.trf.xlu0
        %v706 = vpop.trf.xlu0
        %v707 = vpop.trf.xlu0
        %v708 = vpop.trf.xlu0
        %v709 = vpop.trf.xlu0
        %v710 = vpop.trf.xlu0
        %v711 = vpop.trf.xlu0
        %v712 = vpop.trf.xlu0
        %v713 = vpop.trf.xlu0
        %v714 = vpop.trf.xlu0
        %v715 = vpop.trf.xlu0
        %v716 = vpop.trf.xlu0
        %v717 = vpop.trf.xlu0
        %v718 = vpop.trf.xlu0
        %v719 = vpack.c.bf16 %v703, %v703
        %s720 = sadd.s32 1, %s666
        %s721 = smul.addr %s720, 4
        %s722 = scalar_lea.vmem [#allocation3], %s721
        %723 = vst.msk [vmem:[%s722] sm:$0xf] %vm627, %v719
        %724 = vrot.lane.b32.xlu0 %v672, 56
        %v725 = vpop.permute.xlu0 %724
        %s727 = smul.addr %s720, 4
        %s728 = scalar_lea.vmem [#allocation4], %s727
        %729 = vst.msk [vmem:[%s728] sm:$0xf] %vm627, %v725
        %730 = vrot.lane.b32.xlu0 %v672, 112
        %v731 = vpop.permute.xlu0 %730
        %s733 = scalar_lea.vmem [#allocation2], 8
        %734 = vst.msk [vmem:[%s733] sm:$0xf] %vm627, %v731
        %735 = vrot.lane.b32.xlu0 %v621, 80
        %v736 = vpop.permute.xlu0 %735
        %738 = vxpose.xlu0.b32.start [1/16] %v736, 128
        %739 = vxpose.xlu0.b32.cont [2/16] 0.0, 128
        %740 = vxpose.xlu0.b32.cont [3/16] 0.0, 128
        %741 = vxpose.xlu0.b32.cont [4/16] 0.0, 128
        %742 = vxpose.xlu0.b32.cont [5/16] 0.0, 128
        %743 = vxpose.xlu0.b32.cont [6/16] 0.0, 128
        %744 = vxpose.xlu0.b32.cont [7/16] 0.0, 128
        %745 = vxpose.xlu0.b32.cont [8/16] 0.0, 128
        %746 = vxpose.xlu0.b32.cont [9/16] 0.0, 128
        %747 = vxpose.xlu0.b32.cont [10/16] 0.0, 128
        %748 = vxpose.xlu0.b32.cont [11/16] 0.0, 128
        %749 = vxpose.xlu0.b32.cont [12/16] 0.0, 128
        %750 = vxpose.xlu0.b32.cont [13/16] 0.0, 128
        %751 = vxpose.xlu0.b32.cont [14/16] 0.0, 128
        %752 = vxpose.xlu0.b32.cont [15/16] 0.0, 128
        %753 = vxpose.xlu0.b32.end [16/16] 0.0, 128
        %v754 = vpop.trf.xlu0
        %v755 = vpop.trf.xlu0
        %v756 = vpop.trf.xlu0
        %v757 = vpop.trf.xlu0
        %v758 = vpop.trf.xlu0
        %v759 = vpop.trf.xlu0
        %v760 = vpop.trf.xlu0
        %v761 = vpop.trf.xlu0
        %v762 = vpop.trf.xlu0
        %v763 = vpop.trf.xlu0
        %v764 = vpop.trf.xlu0
        %v765 = vpop.trf.xlu0
        %v766 = vpop.trf.xlu0
        %v767 = vpop.trf.xlu0
        %v768 = vpop.trf.xlu0
        %v769 = vpop.trf.xlu0
        %v770 = vpack.c.bf16 %v754, %v754
        %s771 = sadd.s32 2, %s666
        %s772 = smul.addr %s771, 4
        %s773 = scalar_lea.vmem [#allocation3], %s772
        %774 = vst.msk [vmem:[%s773] sm:$0xf] %vm627, %v770
        %775 = vrot.lane.b32.xlu0 %v672, 48
        %v776 = vpop.permute.xlu0 %775
        %s778 = smul.addr %s771, 4
        %s779 = scalar_lea.vmem [#allocation4], %s778
        %780 = vst.msk [vmem:[%s779] sm:$0xf] %vm627, %v776
        %781 = vrot.lane.b32.xlu0 %v672, 104
        %v782 = vpop.permute.xlu0 %781
        %s784 = scalar_lea.vmem [#allocation2], 12
        %785 = vst.msk [vmem:[%s784] sm:$0xf] %vm627, %v782
        %786 = vrot.lane.b32.xlu0 %v621, 72
        %v787 = vpop.permute.xlu0 %786
        %789 = vxpose.xlu0.b32.start [1/16] %v787, 128
        %790 = vxpose.xlu0.b32.cont [2/16] 0.0, 128
        %791 = vxpose.xlu0.b32.cont [3/16] 0.0, 128
        %792 = vxpose.xlu0.b32.cont [4/16] 0.0, 128
        %793 = vxpose.xlu0.b32.cont [5/16] 0.0, 128
        %794 = vxpose.xlu0.b32.cont [6/16] 0.0, 128
        %795 = vxpose.xlu0.b32.cont [7/16] 0.0, 128
        %796 = vxpose.xlu0.b32.cont [8/16] 0.0, 128
        %797 = vxpose.xlu0.b32.cont [9/16] 0.0, 128
        %798 = vxpose.xlu0.b32.cont [10/16] 0.0, 128
        %799 = vxpose.xlu0.b32.cont [11/16] 0.0, 128
        %800 = vxpose.xlu0.b32.cont [12/16] 0.0, 128
        %801 = vxpose.xlu0.b32.cont [13/16] 0.0, 128
        %802 = vxpose.xlu0.b32.cont [14/16] 0.0, 128
        %803 = vxpose.xlu0.b32.cont [15/16] 0.0, 128
        %804 = vxpose.xlu0.b32.end [16/16] 0.0, 128
        %v805 = vpop.trf.xlu0
        %v806 = vpop.trf.xlu0
        %v807 = vpop.trf.xlu0
        %v808 = vpop.trf.xlu0
        %v809 = vpop.trf.xlu0
        %v810 = vpop.trf.xlu0
        %v811 = vpop.trf.xlu0
        %v812 = vpop.trf.xlu0
        %v813 = vpop.trf.xlu0
        %v814 = vpop.trf.xlu0
        %v815 = vpop.trf.xlu0
        %v816 = vpop.trf.xlu0
        %v817 = vpop.trf.xlu0
        %v818 = vpop.trf.xlu0
        %v819 = vpop.trf.xlu0
        %v820 = vpop.trf.xlu0
        %v821 = vpack.c.bf16 %v805, %v805
        %s822 = sadd.s32 3, %s666
        %s823 = smul.addr %s822, 4
        %s824 = scalar_lea.vmem [#allocation3], %s823
        %825 = vst.msk [vmem:[%s824] sm:$0xf] %vm627, %v821
        %826 = vrot.lane.b32.xlu0 %v672, 40
        %v827 = vpop.permute.xlu0 %826
        %s829 = smul.addr %s822, 4
        %s830 = scalar_lea.vmem [#allocation4], %s829
        %831 = vst.msk [vmem:[%s830] sm:$0xf] %vm627, %v827
        %v832 = vld [vmem:[#allocation2] sm:$0xf]
        %v833 = vld [vmem:[#allocation2 + $0x4] sm:$0xf]
        %v834 = vld [vmem:[#allocation2 + $0x8] sm:$0xf]
        %v835 = vld [vmem:[#allocation2 + $0xc] sm:$0xf]
        %v836 = vld [vmem:[%s668] sm:$0xf]
        %v837 = vld [vmem:[%s668 + $0x4] sm:$0xf]
        %v838 = vld [vmem:[%s668 + $0x8] sm:$0xf]
        %v839 = vld [vmem:[%s668 + $0xc] sm:$0xf]
        %v840 = vld [vmem:[%s677] sm:$0xf]
        %v841 = vld [vmem:[%s677 + $0x4] sm:$0xf]
        %v842 = vld [vmem:[%s677 + $0x8] sm:$0xf]
        %v843 = vld [vmem:[%s677 + $0xc] sm:$0xf]
        %v844 = vlaneseq
        %v845 = vshrl.u32 %v844, 7
        %v846 = vlaneseq
        %v847 = vand.u32 %v846, 127
        %vm848 = vcmp.le.s32.totalorder %v847, %v845
        %v849 = vsel %vm848, 0.0, -1e+30
        %vm850 = vcmask 64512
        %v852 = vsel %vm850, %v832, 0
        %vm854 = vcmask 1043456
        %v856 = vsel %vm854, %v836, 0
        %858 = vmatprep.subr.bf16.mxu0 0
        %859 = vmatpush1.bf16.msra.mxu0 0
        %860 = vmatprep.subr.bf16.mxu0 0
        %861 = vmatpush1.bf16.msra.mxu0 0
        %862 = vmatprep.subr.bf16.mxu0 0
        %863 = vmatpush1.bf16.msra.mxu0 0
        %864 = vmatprep.subr.bf16.mxu0 0
        %865 = vmatpush1.bf16.msra.mxu0 0
        %866 = vmatprep.subr.bf16.mxu0 0
        %867 = vmatpush1.bf16.msra.mxu0 0
        %868 = vmatprep.subr.bf16.mxu0 0
        %869 = vmatpush1.bf16.msra.mxu0 0
        %870 = vmatprep.subr.bf16.mxu0 0
        %871 = vmatpush1.bf16.msra.mxu0 0
        %872 = vmatprep.subr.bf16.mxu0 0
        %873 = vmatpush1.bf16.msra.mxu0 %v856
        %874 = vmatprep.subr.bf16.mxu0 0
        %875 = vmatpush2.bf16.msra.mxu0 0
        %876 = vmatprep.subr.bf16.mxu0 0
        %877 = vmatpush2.bf16.msra.mxu0 0
        %878 = vmatprep.subr.bf16.mxu0 0
        %879 = vmatpush2.bf16.msra.mxu0 0
        %880 = vmatprep.subr.bf16.mxu0 0
        %881 = vmatpush2.bf16.msra.mxu0 0
        %882 = vmatprep.subr.bf16.mxu0 0
        %883 = vmatpush2.bf16.msra.mxu0 0
        %884 = vmatprep.subr.bf16.mxu0 0
        %885 = vmatpush2.bf16.msra.mxu0 0
        %886 = vmatprep.subr.bf16.mxu0 0
        %887 = vmatpush2.bf16.msra.mxu0 0
        %888 = vmatprep.subr.bf16.mxu0 0
        %889 = vmatpush2.bf16.msra.mxu0 0
        %890 = vmatprep.mubr.bf16.mxu0 0
        %891 = vmatmul.mubr.bf16.gmra.mxu0 %v852
        %v892 = vpop.f32.mrf.mxu0
        %v893 = vadd.f32 %v849, %v892
        %v894 = vpop.f32.mrf.mxu0
        %v895 = vpop.f32.mrf.mxu0
        %v896 = vpop.f32.mrf.mxu0
        %897 = vdwg.mxu0
        %v899 = vsel %vm850, %v833, 0
        %v902 = vsel %vm854, %v837, 0
        %904 = vmatprep.subr.bf16.mxu0 0
        %905 = vmatpush1.bf16.msra.mxu0 0
        %906 = vmatprep.subr.bf16.mxu0 0
        %907 = vmatpush1.bf16.msra.mxu0 0
        %908 = vmatprep.subr.bf16.mxu0 0
        %909 = vmatpush1.bf16.msra.mxu0 0
        %910 = vmatprep.subr.bf16.mxu0 0
        %911 = vmatpush1.bf16.msra.mxu0 0
        %912 = vmatprep.subr.bf16.mxu0 0
        %913 = vmatpush1.bf16.msra.mxu0 0
        %914 = vmatprep.subr.bf16.mxu0 0
        %915 = vmatpush1.bf16.msra.mxu0 0
        %916 = vmatprep.subr.bf16.mxu0 0
        %917 = vmatpush1.bf16.msra.mxu0 0
        %918 = vmatprep.subr.bf16.mxu0 0
        %919 = vmatpush1.bf16.msra.mxu0 %v902
        %920 = vmatprep.subr.bf16.mxu0 0
        %921 = vmatpush2.bf16.msra.mxu0 0
        %922 = vmatprep.subr.bf16.mxu0 0
        %923 = vmatpush2.bf16.msra.mxu0 0
        %924 = vmatprep.subr.bf16.mxu0 0
        %925 = vmatpush2.bf16.msra.mxu0 0
        %926 = vmatprep.subr.bf16.mxu0 0
        %927 = vmatpush2.bf16.msra.mxu0 0
        %928 = vmatprep.subr.bf16.mxu0 0
        %929 = vmatpush2.bf16.msra.mxu0 0
        %930 = vmatprep.subr.bf16.mxu0 0
        %931 = vmatpush2.bf16.msra.mxu0 0
        %932 = vmatprep.subr.bf16.mxu0 0
        %933 = vmatpush2.bf16.msra.mxu0 0
        %934 = vmatprep.subr.bf16.mxu0 0
        %935 = vmatpush2.bf16.msra.mxu0 0
        %936 = vmatprep.mubr.bf16.mxu0 0
        %937 = vmatmul.mubr.bf16.gmra.mxu0 %v899
        %v938 = vpop.f32.mrf.mxu0
        %v939 = vadd.f32 %v849, %v938
        %v940 = vpop.f32.mrf.mxu0
        %v941 = vpop.f32.mrf.mxu0
        %v942 = vpop.f32.mrf.mxu0
        %943 = vdwg.mxu0
        %v945 = vsel %vm850, %v834, 0
        %v948 = vsel %vm854, %v838, 0
        %950 = vmatprep.subr.bf16.mxu0 0
        %951 = vmatpush1.bf16.msra.mxu0 0
        %952 = vmatprep.subr.bf16.mxu0 0
        %953 = vmatpush1.bf16.msra.mxu0 0
        %954 = vmatprep.subr.bf16.mxu0 0
        %955 = vmatpush1.bf16.msra.mxu0 0
        %956 = vmatprep.subr.bf16.mxu0 0
        %957 = vmatpush1.bf16.msra.mxu0 0
        %958 = vmatprep.subr.bf16.mxu0 0
        %959 = vmatpush1.bf16.msra.mxu0 0
        %960 = vmatprep.subr.bf16.mxu0 0
        %961 = vmatpush1.bf16.msra.mxu0 0
        %962 = vmatprep.subr.bf16.mxu0 0
        %963 = vmatpush1.bf16.msra.mxu0 0
        %964 = vmatprep.subr.bf16.mxu0 0
        %965 = vmatpush1.bf16.msra.mxu0 %v948
        %966 = vmatprep.subr.bf16.mxu0 0
        %967 = vmatpush2.bf16.msra.mxu0 0
        %968 = vmatprep.subr.bf16.mxu0 0
        %969 = vmatpush2.bf16.msra.mxu0 0
        %970 = vmatprep.subr.bf16.mxu0 0
        %971 = vmatpush2.bf16.msra.mxu0 0
        %972 = vmatprep.subr.bf16.mxu0 0
        %973 = vmatpush2.bf16.msra.mxu0 0
        %974 = vmatprep.subr.bf16.mxu0 0
        %975 = vmatpush2.bf16.msra.mxu0 0
        %976 = vmatprep.subr.bf16.mxu0 0
        %977 = vmatpush2.bf16.msra.mxu0 0
        %978 = vmatprep.subr.bf16.mxu0 0
        %979 = vmatpush2.bf16.msra.mxu0 0
        %980 = vmatprep.subr.bf16.mxu0 0
        %981 = vmatpush2.bf16.msra.mxu0 0
        %982 = vmatprep.mubr.bf16.mxu0 0
        %983 = vmatmul.mubr.bf16.gmra.mxu0 %v945
        %v984 = vpop.f32.mrf.mxu0
        %v985 = vadd.f32 %v849, %v984
        %v986 = vpop.f32.mrf.mxu0
        %v987 = vpop.f32.mrf.mxu0
        %v988 = vpop.f32.mrf.mxu0
        %989 = vdwg.mxu0
        %v991 = vsel %vm850, %v835, 0
        %v994 = vsel %vm854, %v839, 0
        %996 = vmatprep.subr.bf16.mxu0 0
        %997 = vmatpush1.bf16.msra.mxu0 0
        %998 = vmatprep.subr.bf16.mxu0 0
        %999 = vmatpush1.bf16.msra.mxu0 0
        %1000 = vmatprep.subr.bf16.mxu0 0
        %1001 = vmatpush1.bf16.msra.mxu0 0
        %1002 = vmatprep.subr.bf16.mxu0 0
        %1003 = vmatpush1.bf16.msra.mxu0 0
        %1004 = vmatprep.subr.bf16.mxu0 0
        %1005 = vmatpush1.bf16.msra.mxu0 0
        %1006 = vmatprep.subr.bf16.mxu0 0
        %1007 = vmatpush1.bf16.msra.mxu0 0
        %1008 = vmatprep.subr.bf16.mxu0 0
        %1009 = vmatpush1.bf16.msra.mxu0 0
        %1010 = vmatprep.subr.bf16.mxu0 0
        %1011 = vmatpush1.bf16.msra.mxu0 %v994
        %1012 = vmatprep.subr.bf16.mxu0 0
        %1013 = vmatpush2.bf16.msra.mxu0 0
        %1014 = vmatprep.subr.bf16.mxu0 0
        %1015 = vmatpush2.bf16.msra.mxu0 0
        %1016 = vmatprep.subr.bf16.mxu0 0
        %1017 = vmatpush2.bf16.msra.mxu0 0
        %1018 = vmatprep.subr.bf16.mxu0 0
        %1019 = vmatpush2.bf16.msra.mxu0 0
        %1020 = vmatprep.subr.bf16.mxu0 0
        %1021 = vmatpush2.bf16.msra.mxu0 0
        %1022 = vmatprep.subr.bf16.mxu0 0
        %1023 = vmatpush2.bf16.msra.mxu0 0
        %1024 = vmatprep.subr.bf16.mxu0 0
        %1025 = vmatpush2.bf16.msra.mxu0 0
        %1026 = vmatprep.subr.bf16.mxu0 0
        %1027 = vmatpush2.bf16.msra.mxu0 0
        %1028 = vmatprep.mubr.bf16.mxu0 0
        %1029 = vmatmul.mubr.bf16.gmra.mxu0 %v991
        %v1030 = vpop.f32.mrf.mxu0
        %v1031 = vadd.f32 %v849, %v1030
        %v1032 = vpop.f32.mrf.mxu0
        %v1033 = vpop.f32.mrf.mxu0
        %v1034 = vpop.f32.mrf.mxu0
        %1035 = vdwg.mxu0
        %v1036 = vsel %vm850, %v893, -inf
        %1037 = vmax.xlane.f32.xlu0 %v1036
        %v1038 = vpop.xlane.xlu0 %1037
        %v1039 = vsel %vm850, %v939, -inf
        %1040 = vmax.xlane.f32.xlu0 %v1039
        %v1041 = vpop.xlane.xlu0 %1040
        %v1042 = vsel %vm850, %v985, -inf
        %1043 = vmax.xlane.f32.xlu0 %v1042
        %v1044 = vpop.xlane.xlu0 %1043
        %v1045 = vsel %vm850, %v1031, -inf
        %1046 = vmax.xlane.f32.xlu0 %v1045
        %v1047 = vpop.xlane.xlu0 %1046
        %v1048 = vsub.f32 %v893, %v1038
        %v1049 = vsub.f32 %v939, %v1041
        %v1050 = vsub.f32 %v985, %v1044
        %v1051 = vsub.f32 %v1031, %v1047
        %v1052 = vmul.f32 %v1048, 1.442695
        %v1053 = vpow.pop %v1052
        %v1054 = vmul.f32 %v1049, 1.442695
        %v1055 = vpow.pop %v1054
        %v1056 = vmul.f32 %v1050, 1.442695
        %v1057 = vpow.pop %v1056
        %v1058 = vmul.f32 %v1051, 1.442695
        %v1059 = vpow.pop %v1058
        %v1060 = vsel %vm850, %v1053, 0.0
        %1061 = vadd.xlane.f32.xlu0 %v1060
        %v1062 = vpop.xlane.xlu0 %1061
        %v1063 = vsel %vm850, %v1055, 0.0
        %1064 = vadd.xlane.f32.xlu0 %v1063
        %v1065 = vpop.xlane.xlu0 %1064
        %v1066 = vsel %vm850, %v1057, 0.0
        %1067 = vadd.xlane.f32.xlu0 %v1066
        %v1068 = vpop.xlane.xlu0 %1067
        %v1069 = vsel %vm850, %v1059, 0.0
        %1070 = vadd.xlane.f32.xlu0 %v1069
        %v1071 = vpop.xlane.xlu0 %1070
        %v1072 = vpack.c.bf16 %v1053, %v1053
        %v1073 = vpack.c.bf16 %v1055, %v1055
        %v1074 = vpack.c.bf16 %v1057, %v1057
        %v1075 = vpack.c.bf16 %v1059, %v1059
        %v1077 = vsel %vm850, %v1072, 0
        %v1080 = vsel %vm854, %v840, 0
        %1082 = vmatprep.subr.bf16.mxu0 0
        %1083 = vmatpush1.bf16.msra.mxu0 0
        %1084 = vmatprep.subr.bf16.mxu0 0
        %1085 = vmatpush1.bf16.msra.mxu0 0
        %1086 = vmatprep.subr.bf16.mxu0 0
        %1087 = vmatpush1.bf16.msra.mxu0 0
        %1088 = vmatprep.subr.bf16.mxu0 0
        %1089 = vmatpush1.bf16.msra.mxu0 0
        %1090 = vmatprep.subr.bf16.mxu0 0
        %1091 = vmatpush1.bf16.msra.mxu0 0
        %1092 = vmatprep.subr.bf16.mxu0 0
        %1093 = vmatpush1.bf16.msra.mxu0 0
        %1094 = vmatprep.subr.bf16.mxu0 0
        %1095 = vmatpush1.bf16.msra.mxu0 0
        %1096 = vmatprep.subr.bf16.mxu0 0
        %1097 = vmatpush1.bf16.msra.mxu0 %v1080
        %1098 = vmatprep.subr.bf16.mxu0 0
        %1099 = vmatpush2.bf16.msra.mxu0 0
        %1100 = vmatprep.subr.bf16.mxu0 0
        %1101 = vmatpush2.bf16.msra.mxu0 0
        %1102 = vmatprep.subr.bf16.mxu0 0
        %1103 = vmatpush2.bf16.msra.mxu0 0
        %1104 = vmatprep.subr.bf16.mxu0 0
        %1105 = vmatpush2.bf16.msra.mxu0 0
        %1106 = vmatprep.subr.bf16.mxu0 0
        %1107 = vmatpush2.bf16.msra.mxu0 0
        %1108 = vmatprep.subr.bf16.mxu0 0
        %1109 = vmatpush2.bf16.msra.mxu0 0
        %1110 = vmatprep.subr.bf16.mxu0 0
        %1111 = vmatpush2.bf16.msra.mxu0 0
        %1112 = vmatprep.subr.bf16.mxu0 0
        %1113 = vmatpush2.bf16.msra.mxu0 0
        %1114 = vmatprep.mubr.bf16.mxu0 0
        %1115 = vmatmul.mubr.bf16.gmra.mxu0 %v1077
        %v1116 = vpop.f32.mrf.mxu0
        %v1117 = vadd.f32 0.0, %v1116
        %v1118 = vpop.f32.mrf.mxu0
        %v1119 = vpop.f32.mrf.mxu0
        %v1120 = vpop.f32.mrf.mxu0
        %1121 = vdwg.mxu0
        %v1123 = vsel %vm850, %v1073, 0
        %v1126 = vsel %vm854, %v841, 0
        %1128 = vmatprep.subr.bf16.mxu0 0
        %1129 = vmatpush1.bf16.msra.mxu0 0
        %1130 = vmatprep.subr.bf16.mxu0 0
        %1131 = vmatpush1.bf16.msra.mxu0 0
        %1132 = vmatprep.subr.bf16.mxu0 0
        %1133 = vmatpush1.bf16.msra.mxu0 0
        %1134 = vmatprep.subr.bf16.mxu0 0
        %1135 = vmatpush1.bf16.msra.mxu0 0
        %1136 = vmatprep.subr.bf16.mxu0 0
        %1137 = vmatpush1.bf16.msra.mxu0 0
        %1138 = vmatprep.subr.bf16.mxu0 0
        %1139 = vmatpush1.bf16.msra.mxu0 0
        %1140 = vmatprep.subr.bf16.mxu0 0
        %1141 = vmatpush1.bf16.msra.mxu0 0
        %1142 = vmatprep.subr.bf16.mxu0 0
        %1143 = vmatpush1.bf16.msra.mxu0 %v1126
        %1144 = vmatprep.subr.bf16.mxu0 0
        %1145 = vmatpush2.bf16.msra.mxu0 0
        %1146 = vmatprep.subr.bf16.mxu0 0
        %1147 = vmatpush2.bf16.msra.mxu0 0
        %1148 = vmatprep.subr.bf16.mxu0 0
        %1149 = vmatpush2.bf16.msra.mxu0 0
        %1150 = vmatprep.subr.bf16.mxu0 0
        %1151 = vmatpush2.bf16.msra.mxu0 0
        %1152 = vmatprep.subr.bf16.mxu0 0
        %1153 = vmatpush2.bf16.msra.mxu0 0
        %1154 = vmatprep.subr.bf16.mxu0 0
        %1155 = vmatpush2.bf16.msra.mxu0 0
        %1156 = vmatprep.subr.bf16.mxu0 0
        %1157 = vmatpush2.bf16.msra.mxu0 0
        %1158 = vmatprep.subr.bf16.mxu0 0
        %1159 = vmatpush2.bf16.msra.mxu0 0
        %1160 = vmatprep.mubr.bf16.mxu0 0
        %1161 = vmatmul.mubr.bf16.gmra.mxu0 %v1123
        %v1162 = vpop.f32.mrf.mxu0
        %v1163 = vadd.f32 0.0, %v1162
        %v1164 = vpop.f32.mrf.mxu0
        %v1165 = vpop.f32.mrf.mxu0
        %v1166 = vpop.f32.mrf.mxu0
        %1167 = vdwg.mxu0
        %v1169 = vsel %vm850, %v1074, 0
        %v1172 = vsel %vm854, %v842, 0
        %1174 = vmatprep.subr.bf16.mxu0 0
        %1175 = vmatpush1.bf16.msra.mxu0 0
        %1176 = vmatprep.subr.bf16.mxu0 0
        %1177 = vmatpush1.bf16.msra.mxu0 0
        %1178 = vmatprep.subr.bf16.mxu0 0
        %1179 = vmatpush1.bf16.msra.mxu0 0
        %1180 = vmatprep.subr.bf16.mxu0 0
        %1181 = vmatpush1.bf16.msra.mxu0 0
        %1182 = vmatprep.subr.bf16.mxu0 0
        %1183 = vmatpush1.bf16.msra.mxu0 0
        %1184 = vmatprep.subr.bf16.mxu0 0
        %1185 = vmatpush1.bf16.msra.mxu0 0
        %1186 = vmatprep.subr.bf16.mxu0 0
        %1187 = vmatpush1.bf16.msra.mxu0 0
        %1188 = vmatprep.subr.bf16.mxu0 0
        %1189 = vmatpush1.bf16.msra.mxu0 %v1172
        %1190 = vmatprep.subr.bf16.mxu0 0
        %1191 = vmatpush2.bf16.msra.mxu0 0
        %1192 = vmatprep.subr.bf16.mxu0 0
        %1193 = vmatpush2.bf16.msra.mxu0 0
        %1194 = vmatprep.subr.bf16.mxu0 0
        %1195 = vmatpush2.bf16.msra.mxu0 0
        %1196 = vmatprep.subr.bf16.mxu0 0
        %1197 = vmatpush2.bf16.msra.mxu0 0
        %1198 = vmatprep.subr.bf16.mxu0 0
        %1199 = vmatpush2.bf16.msra.mxu0 0
        %1200 = vmatprep.subr.bf16.mxu0 0
        %1201 = vmatpush2.bf16.msra.mxu0 0
        %1202 = vmatprep.subr.bf16.mxu0 0
        %1203 = vmatpush2.bf16.msra.mxu0 0
        %1204 = vmatprep.subr.bf16.mxu0 0
        %1205 = vmatpush2.bf16.msra.mxu0 0
        %1206 = vmatprep.mubr.bf16.mxu0 0
        %1207 = vmatmul.mubr.bf16.gmra.mxu0 %v1169
        %v1208 = vpop.f32.mrf.mxu0
        %v1209 = vadd.f32 0.0, %v1208
        %v1210 = vpop.f32.mrf.mxu0
        %v1211 = vpop.f32.mrf.mxu0
        %v1212 = vpop.f32.mrf.mxu0
        %1213 = vdwg.mxu0
        %v1215 = vsel %vm850, %v1075, 0
        %v1218 = vsel %vm854, %v843, 0
        %1220 = vmatprep.subr.bf16.mxu0 0
        %1221 = vmatpush1.bf16.msra.mxu0 0
        %1222 = vmatprep.subr.bf16.mxu0 0
        %1223 = vmatpush1.bf16.msra.mxu0 0
        %1224 = vmatprep.subr.bf16.mxu0 0
        %1225 = vmatpush1.bf16.msra.mxu0 0
        %1226 = vmatprep.subr.bf16.mxu0 0
        %1227 = vmatpush1.bf16.msra.mxu0 0
        %1228 = vmatprep.subr.bf16.mxu0 0
        %1229 = vmatpush1.bf16.msra.mxu0 0
        %1230 = vmatprep.subr.bf16.mxu0 0
        %1231 = vmatpush1.bf16.msra.mxu0 0
        %1232 = vmatprep.subr.bf16.mxu0 0
        %1233 = vmatpush1.bf16.msra.mxu0 0
        %1234 = vmatprep.subr.bf16.mxu0 0
        %1235 = vmatpush1.bf16.msra.mxu0 %v1218
        %1236 = vmatprep.subr.bf16.mxu0 0
        %1237 = vmatpush2.bf16.msra.mxu0 0
        %1238 = vmatprep.subr.bf16.mxu0 0
        %1239 = vmatpush2.bf16.msra.mxu0 0
        %1240 = vmatprep.subr.bf16.mxu0 0
        %1241 = vmatpush2.bf16.msra.mxu0 0
        %1242 = vmatprep.subr.bf16.mxu0 0
        %1243 = vmatpush2.bf16.msra.mxu0 0
        %1244 = vmatprep.subr.bf16.mxu0 0
        %1245 = vmatpush2.bf16.msra.mxu0 0
        %1246 = vmatprep.subr.bf16.mxu0 0
        %1247 = vmatpush2.bf16.msra.mxu0 0
        %1248 = vmatprep.subr.bf16.mxu0 0
        %1249 = vmatpush2.bf16.msra.mxu0 0
        %1250 = vmatprep.subr.bf16.mxu0 0
        %1251 = vmatpush2.bf16.msra.mxu0 0
        %1252 = vmatprep.mubr.bf16.mxu0 0
        %1253 = vmatmul.mubr.bf16.gmra.mxu0 %v1215
        %v1254 = vpop.f32.mrf.mxu0
        %v1255 = vadd.f32 0.0, %v1254
        %v1256 = vpop.f32.mrf.mxu0
        %v1257 = vpop.f32.mrf.mxu0
        %v1258 = vpop.f32.mrf.mxu0
        %1259 = vdwg.mxu0
        // While loop
        $region101: #{tpu_custom_call.1} parent=71 // loop_pre_header
          _
        $region102: #{tpu_custom_call.1} parent=71 // loop_header
          %s1261 = sphi 0, %s1263
          %p1262 = scmp.ge.s32.totalorder %s1261, %s36
          %v1266 = vphi %v1038, %v1469
          %v1267 = vphi %v1041, %v1470
          %v1268 = vphi %v1044, %v1471
          %v1269 = vphi %v1047, %v1472
          %v1270 = vphi %v1062, %v1513
          %v1271 = vphi %v1065, %v1514
          %v1272 = vphi %v1068, %v1515
          %v1273 = vphi %v1071, %v1516
          %v1274 = vphi %v1117, %v1715
          %v1275 = vphi %v1163, %v1716
          %v1276 = vphi %v1209, %v1717
          %v1277 = vphi %v1255, %v1718
        $region103: #{tpu_custom_call.1} parent=71 // loop_header_branch
          %1265 = sbr.rel (%p1262) target = $region107
        $region104: #{tpu_custom_call.1} parent=71 // loop_body
          %s1278 = smul.u32 %s1261, 4
          %s1279 = smul.addr %s1278, 4
          %s1280 = scalar_lea.vmem [#allocation3], %s1279
          %v1281 = vld [vmem:[%s1280] sm:$0xf]
          %v1282 = vld [vmem:[%s1280 + $0x4] sm:$0xf]
          %v1283 = vld [vmem:[%s1280 + $0x8] sm:$0xf]
          %v1284 = vld [vmem:[%s1280 + $0xc] sm:$0xf]
          %v1286 = vsel %vm854, %v1281, 0
          %1288 = vmatprep.subr.bf16.mxu0 0
          %1289 = vmatpush1.bf16.msra.mxu0 0
          %1290 = vmatprep.subr.bf16.mxu0 0
          %1291 = vmatpush1.bf16.msra.mxu0 0
          %1292 = vmatprep.subr.bf16.mxu0 0
          %1293 = vmatpush1.bf16.msra.mxu0 0
          %1294 = vmatprep.subr.bf16.mxu0 0
          %1295 = vmatpush1.bf16.msra.mxu0 0
          %1296 = vmatprep.subr.bf16.mxu0 0
          %1297 = vmatpush1.bf16.msra.mxu0 0
          %1298 = vmatprep.subr.bf16.mxu0 0
          %1299 = vmatpush1.bf16.msra.mxu0 0
          %1300 = vmatprep.subr.bf16.mxu0 0
          %1301 = vmatpush1.bf16.msra.mxu0 0
          %1302 = vmatprep.subr.bf16.mxu0 0
          %1303 = vmatpush1.bf16.msra.mxu0 %v1286
          %1304 = vmatprep.subr.bf16.mxu0 0
          %1305 = vmatpush2.bf16.msra.mxu0 0
          %1306 = vmatprep.subr.bf16.mxu0 0
          %1307 = vmatpush2.bf16.msra.mxu0 0
          %1308 = vmatprep.subr.bf16.mxu0 0
          %1309 = vmatpush2.bf16.msra.mxu0 0
          %1310 = vmatprep.subr.bf16.mxu0 0
          %1311 = vmatpush2.bf16.msra.mxu0 0
          %1312 = vmatprep.subr.bf16.mxu0 0
          %1313 = vmatpush2.bf16.msra.mxu0 0
          %1314 = vmatprep.subr.bf16.mxu0 0
          %1315 = vmatpush2.bf16.msra.mxu0 0
          %1316 = vmatprep.subr.bf16.mxu0 0
          %1317 = vmatpush2.bf16.msra.mxu0 0
          %1318 = vmatprep.subr.bf16.mxu0 0
          %1319 = vmatpush2.bf16.msra.mxu0 0
          %1320 = vmatprep.mubr.bf16.mxu0 0
          %1321 = vmatmul.mubr.bf16.gmra.mxu0 %v852
          %v1322 = vpop.f32.mrf.mxu0
          %v1323 = vadd.f32 0.0, %v1322
          %v1324 = vpop.f32.mrf.mxu0
          %v1325 = vpop.f32.mrf.mxu0
          %v1326 = vpop.f32.mrf.mxu0
          %1327 = vdwg.mxu0
          %v1329 = vsel %vm854, %v1282, 0
          %1331 = vmatprep.subr.bf16.mxu0 0
          %1332 = vmatpush1.bf16.msra.mxu0 0
          %1333 = vmatprep.subr.bf16.mxu0 0
          %1334 = vmatpush1.bf16.msra.mxu0 0
          %1335 = vmatprep.subr.bf16.mxu0 0
          %1336 = vmatpush1.bf16.msra.mxu0 0
          %1337 = vmatprep.subr.bf16.mxu0 0
          %1338 = vmatpush1.bf16.msra.mxu0 0
          %1339 = vmatprep.subr.bf16.mxu0 0
          %1340 = vmatpush1.bf16.msra.mxu0 0
          %1341 = vmatprep.subr.bf16.mxu0 0
          %1342 = vmatpush1.bf16.msra.mxu0 0
          %1343 = vmatprep.subr.bf16.mxu0 0
          %1344 = vmatpush1.bf16.msra.mxu0 0
          %1345 = vmatprep.subr.bf16.mxu0 0
          %1346 = vmatpush1.bf16.msra.mxu0 %v1329
          %1347 = vmatprep.subr.bf16.mxu0 0
          %1348 = vmatpush2.bf16.msra.mxu0 0
          %1349 = vmatprep.subr.bf16.mxu0 0
          %1350 = vmatpush2.bf16.msra.mxu0 0
          %1351 = vmatprep.subr.bf16.mxu0 0
          %1352 = vmatpush2.bf16.msra.mxu0 0
          %1353 = vmatprep.subr.bf16.mxu0 0
          %1354 = vmatpush2.bf16.msra.mxu0 0
          %1355 = vmatprep.subr.bf16.mxu0 0
          %1356 = vmatpush2.bf16.msra.mxu0 0
          %1357 = vmatprep.subr.bf16.mxu0 0
          %1358 = vmatpush2.bf16.msra.mxu0 0
          %1359 = vmatprep.subr.bf16.mxu0 0
          %1360 = vmatpush2.bf16.msra.mxu0 0
          %1361 = vmatprep.subr.bf16.mxu0 0
          %1362 = vmatpush2.bf16.msra.mxu0 0
          %1363 = vmatprep.mubr.bf16.mxu0 0
          %1364 = vmatmul.mubr.bf16.gmra.mxu0 %v899
          %v1365 = vpop.f32.mrf.mxu0
          %v1366 = vadd.f32 0.0, %v1365
          %v1367 = vpop.f32.mrf.mxu0
          %v1368 = vpop.f32.mrf.mxu0
          %v1369 = vpop.f32.mrf.mxu0
          %1370 = vdwg.mxu0
          %v1372 = vsel %vm854, %v1283, 0
          %1374 = vmatprep.subr.bf16.mxu0 0
          %1375 = vmatpush1.bf16.msra.mxu0 0
          %1376 = vmatprep.subr.bf16.mxu0 0
          %1377 = vmatpush1.bf16.msra.mxu0 0
          %1378 = vmatprep.subr.bf16.mxu0 0
          %1379 = vmatpush1.bf16.msra.mxu0 0
          %1380 = vmatprep.subr.bf16.mxu0 0
          %1381 = vmatpush1.bf16.msra.mxu0 0
          %1382 = vmatprep.subr.bf16.mxu0 0
          %1383 = vmatpush1.bf16.msra.mxu0 0
          %1384 = vmatprep.subr.bf16.mxu0 0
          %1385 = vmatpush1.bf16.msra.mxu0 0
          %1386 = vmatprep.subr.bf16.mxu0 0
          %1387 = vmatpush1.bf16.msra.mxu0 0
          %1388 = vmatprep.subr.bf16.mxu0 0
          %1389 = vmatpush1.bf16.msra.mxu0 %v1372
          %1390 = vmatprep.subr.bf16.mxu0 0
          %1391 = vmatpush2.bf16.msra.mxu0 0
          %1392 = vmatprep.subr.bf16.mxu0 0
          %1393 = vmatpush2.bf16.msra.mxu0 0
          %1394 = vmatprep.subr.bf16.mxu0 0
          %1395 = vmatpush2.bf16.msra.mxu0 0
          %1396 = vmatprep.subr.bf16.mxu0 0
          %1397 = vmatpush2.bf16.msra.mxu0 0
          %1398 = vmatprep.subr.bf16.mxu0 0
          %1399 = vmatpush2.bf16.msra.mxu0 0
          %1400 = vmatprep.subr.bf16.mxu0 0
          %1401 = vmatpush2.bf16.msra.mxu0 0
          %1402 = vmatprep.subr.bf16.mxu0 0
          %1403 = vmatpush2.bf16.msra.mxu0 0
          %1404 = vmatprep.subr.bf16.mxu0 0
          %1405 = vmatpush2.bf16.msra.mxu0 0
          %1406 = vmatprep.mubr.bf16.mxu0 0
          %1407 = vmatmul.mubr.bf16.gmra.mxu0 %v945
          %v1408 = vpop.f32.mrf.mxu0
          %v1409 = vadd.f32 0.0, %v1408
          %v1410 = vpop.f32.mrf.mxu0
          %v1411 = vpop.f32.mrf.mxu0
          %v1412 = vpop.f32.mrf.mxu0
          %1413 = vdwg.mxu0
          %v1415 = vsel %vm854, %v1284, 0
          %1417 = vmatprep.subr.bf16.mxu0 0
          %1418 = vmatpush1.bf16.msra.mxu0 0
          %1419 = vmatprep.subr.bf16.mxu0 0
          %1420 = vmatpush1.bf16.msra.mxu0 0
          %1421 = vmatprep.subr.bf16.mxu0 0
          %1422 = vmatpush1.bf16.msra.mxu0 0
          %1423 = vmatprep.subr.bf16.mxu0 0
          %1424 = vmatpush1.bf16.msra.mxu0 0
          %1425 = vmatprep.subr.bf16.mxu0 0
          %1426 = vmatpush1.bf16.msra.mxu0 0
          %1427 = vmatprep.subr.bf16.mxu0 0
          %1428 = vmatpush1.bf16.msra.mxu0 0
          %1429 = vmatprep.subr.bf16.mxu0 0
          %1430 = vmatpush1.bf16.msra.mxu0 0
          %1431 = vmatprep.subr.bf16.mxu0 0
          %1432 = vmatpush1.bf16.msra.mxu0 %v1415
          %1433 = vmatprep.subr.bf16.mxu0 0
          %1434 = vmatpush2.bf16.msra.mxu0 0
          %1435 = vmatprep.subr.bf16.mxu0 0
          %1436 = vmatpush2.bf16.msra.mxu0 0
          %1437 = vmatprep.subr.bf16.mxu0 0
          %1438 = vmatpush2.bf16.msra.mxu0 0
          %1439 = vmatprep.subr.bf16.mxu0 0
          %1440 = vmatpush2.bf16.msra.mxu0 0
          %1441 = vmatprep.subr.bf16.mxu0 0
          %1442 = vmatpush2.bf16.msra.mxu0 0
          %1443 = vmatprep.subr.bf16.mxu0 0
          %1444 = vmatpush2.bf16.msra.mxu0 0
          %1445 = vmatprep.subr.bf16.mxu0 0
          %1446 = vmatpush2.bf16.msra.mxu0 0
          %1447 = vmatprep.subr.bf16.mxu0 0
          %1448 = vmatpush2.bf16.msra.mxu0 0
          %1449 = vmatprep.mubr.bf16.mxu0 0
          %1450 = vmatmul.mubr.bf16.gmra.mxu0 %v991
          %v1451 = vpop.f32.mrf.mxu0
          %v1452 = vadd.f32 0.0, %v1451
          %v1453 = vpop.f32.mrf.mxu0
          %v1454 = vpop.f32.mrf.mxu0
          %v1455 = vpop.f32.mrf.mxu0
          %1456 = vdwg.mxu0
          %v1457 = vsel %vm850, %v1323, -inf
          %1458 = vmax.xlane.f32.xlu0 %v1457
          %v1459 = vpop.xlane.xlu0 %1458
          %v1460 = vsel %vm850, %v1366, -inf
          %1461 = vmax.xlane.f32.xlu0 %v1460
          %v1462 = vpop.xlane.xlu0 %1461
          %v1463 = vsel %vm850, %v1409, -inf
          %1464 = vmax.xlane.f32.xlu0 %v1463
          %v1465 = vpop.xlane.xlu0 %1464
          %v1466 = vsel %vm850, %v1452, -inf
          %1467 = vmax.xlane.f32.xlu0 %v1466
          %v1468 = vpop.xlane.xlu0 %1467
          %v1469 = vmax.f32 %v1266, %v1459
          %v1470 = vmax.f32 %v1267, %v1462
          %v1471 = vmax.f32 %v1268, %v1465
          %v1472 = vmax.f32 %v1269, %v1468
          %v1473 = vsub.f32 %v1266, %v1469
          %v1474 = vsub.f32 %v1267, %v1470
          %v1475 = vsub.f32 %v1268, %v1471
          %v1476 = vsub.f32 %v1269, %v1472
          %v1477 = vmul.f32 %v1473, 1.442695
          %v1478 = vpow.pop %v1477
          %v1479 = vmul.f32 %v1474, 1.442695
          %v1480 = vpow.pop %v1479
          %v1481 = vmul.f32 %v1475, 1.442695
          %v1482 = vpow.pop %v1481
          %v1483 = vmul.f32 %v1476, 1.442695
          %v1484 = vpow.pop %v1483
          %v1485 = vsub.f32 %v1323, %v1469
          %v1486 = vsub.f32 %v1366, %v1470
          %v1487 = vsub.f32 %v1409, %v1471
          %v1488 = vsub.f32 %v1452, %v1472
          %v1489 = vmul.f32 %v1485, 1.442695
          %v1490 = vpow.pop %v1489
          %v1491 = vmul.f32 %v1486, 1.442695
          %v1492 = vpow.pop %v1491
          %v1493 = vmul.f32 %v1487, 1.442695
          %v1494 = vpow.pop %v1493
          %v1495 = vmul.f32 %v1488, 1.442695
          %v1496 = vpow.pop %v1495
          %v1497 = vmul.f32 %v1478, %v1270
          %v1498 = vmul.f32 %v1480, %v1271
          %v1499 = vmul.f32 %v1482, %v1272
          %v1500 = vmul.f32 %v1484, %v1273
          %v1501 = vsel %vm850, %v1490, 0.0
          %1502 = vadd.xlane.f32.xlu0 %v1501
          %v1503 = vpop.xlane.xlu0 %1502
          %v1504 = vsel %vm850, %v1492, 0.0
          %1505 = vadd.xlane.f32.xlu0 %v1504
          %v1506 = vpop.xlane.xlu0 %1505
          %v1507 = vsel %vm850, %v1494, 0.0
          %1508 = vadd.xlane.f32.xlu0 %v1507
          %v1509 = vpop.xlane.xlu0 %1508
          %v1510 = vsel %vm850, %v1496, 0.0
          %1511 = vadd.xlane.f32.xlu0 %v1510
          %v1512 = vpop.xlane.xlu0 %1511
          %v1513 = vadd.f32 %v1497, %v1503
          %v1514 = vadd.f32 %v1498, %v1506
          %v1515 = vadd.f32 %v1499, %v1509
          %v1516 = vadd.f32 %v1500, %v1512
          %v1517 = vmul.f32 %v1478, %v1274
          %v1518 = vmul.f32 %v1480, %v1275
          %v1519 = vmul.f32 %v1482, %v1276
          %v1520 = vmul.f32 %v1484, %v1277
          %v1521 = vpack.c.bf16 %v1490, %v1490
          %v1522 = vpack.c.bf16 %v1492, %v1492
          %v1523 = vpack.c.bf16 %v1494, %v1494
          %v1524 = vpack.c.bf16 %v1496, %v1496
          %s1525 = smul.addr %s1278, 4
          %s1526 = scalar_lea.vmem [#allocation4], %s1525
          %v1527 = vld [vmem:[%s1526] sm:$0xf]
          %v1528 = vld [vmem:[%s1526 + $0x4] sm:$0xf]
          %v1529 = vld [vmem:[%s1526 + $0x8] sm:$0xf]
          %v1530 = vld [vmem:[%s1526 + $0xc] sm:$0xf]
          %v1532 = vsel %vm850, %v1521, 0
          %v1535 = vsel %vm854, %v1527, 0
          %1537 = vmatprep.subr.bf16.mxu0 0
          %1538 = vmatpush1.bf16.msra.mxu0 0
          %1539 = vmatprep.subr.bf16.mxu0 0
          %1540 = vmatpush1.bf16.msra.mxu0 0
          %1541 = vmatprep.subr.bf16.mxu0 0
          %1542 = vmatpush1.bf16.msra.mxu0 0
          %1543 = vmatprep.subr.bf16.mxu0 0
          %1544 = vmatpush1.bf16.msra.mxu0 0
          %1545 = vmatprep.subr.bf16.mxu0 0
          %1546 = vmatpush1.bf16.msra.mxu0 0
          %1547 = vmatprep.subr.bf16.mxu0 0
          %1548 = vmatpush1.bf16.msra.mxu0 0
          %1549 = vmatprep.subr.bf16.mxu0 0
          %1550 = vmatpush1.bf16.msra.mxu0 0
          %1551 = vmatprep.subr.bf16.mxu0 0
          %1552 = vmatpush1.bf16.msra.mxu0 %v1535
          %1553 = vmatprep.subr.bf16.mxu0 0
          %1554 = vmatpush2.bf16.msra.mxu0 0
          %1555 = vmatprep.subr.bf16.mxu0 0
          %1556 = vmatpush2.bf16.msra.mxu0 0
          %1557 = vmatprep.subr.bf16.mxu0 0
          %1558 = vmatpush2.bf16.msra.mxu0 0
          %1559 = vmatprep.subr.bf16.mxu0 0
          %1560 = vmatpush2.bf16.msra.mxu0 0
          %1561 = vmatprep.subr.bf16.mxu0 0
          %1562 = vmatpush2.bf16.msra.mxu0 0
          %1563 = vmatprep.subr.bf16.mxu0 0
          %1564 = vmatpush2.bf16.msra.mxu0 0
          %1565 = vmatprep.subr.bf16.mxu0 0
          %1566 = vmatpush2.bf16.msra.mxu0 0
          %1567 = vmatprep.subr.bf16.mxu0 0
          %1568 = vmatpush2.bf16.msra.mxu0 0
          %1569 = vmatprep.mubr.bf16.mxu0 0
          %1570 = vmatmul.mubr.bf16.gmra.mxu0 %v1532
          %v1571 = vpop.f32.mrf.mxu0
          %v1572 = vadd.f32 0.0, %v1571
          %v1573 = vpop.f32.mrf.mxu0
          %v1574 = vpop.f32.mrf.mxu0
          %v1575 = vpop.f32.mrf.mxu0
          %1576 = vdwg.mxu0
          %v1578 = vsel %vm850, %v1522, 0
          %v1581 = vsel %vm854, %v1528, 0
          %1583 = vmatprep.subr.bf16.mxu0 0
          %1584 = vmatpush1.bf16.msra.mxu0 0
          %1585 = vmatprep.subr.bf16.mxu0 0
          %1586 = vmatpush1.bf16.msra.mxu0 0
          %1587 = vmatprep.subr.bf16.mxu0 0
          %1588 = vmatpush1.bf16.msra.mxu0 0
          %1589 = vmatprep.subr.bf16.mxu0 0
          %1590 = vmatpush1.bf16.msra.mxu0 0
          %1591 = vmatprep.subr.bf16.mxu0 0
          %1592 = vmatpush1.bf16.msra.mxu0 0
          %1593 = vmatprep.subr.bf16.mxu0 0
          %1594 = vmatpush1.bf16.msra.mxu0 0
          %1595 = vmatprep.subr.bf16.mxu0 0
          %1596 = vmatpush1.bf16.msra.mxu0 0
          %1597 = vmatprep.subr.bf16.mxu0 0
          %1598 = vmatpush1.bf16.msra.mxu0 %v1581
          %1599 = vmatprep.subr.bf16.mxu0 0
          %1600 = vmatpush2.bf16.msra.mxu0 0
          %1601 = vmatprep.subr.bf16.mxu0 0
          %1602 = vmatpush2.bf16.msra.mxu0 0
          %1603 = vmatprep.subr.bf16.mxu0 0
          %1604 = vmatpush2.bf16.msra.mxu0 0
          %1605 = vmatprep.subr.bf16.mxu0 0
          %1606 = vmatpush2.bf16.msra.mxu0 0
          %1607 = vmatprep.subr.bf16.mxu0 0
          %1608 = vmatpush2.bf16.msra.mxu0 0
          %1609 = vmatprep.subr.bf16.mxu0 0
          %1610 = vmatpush2.bf16.msra.mxu0 0
          %1611 = vmatprep.subr.bf16.mxu0 0
          %1612 = vmatpush2.bf16.msra.mxu0 0
          %1613 = vmatprep.subr.bf16.mxu0 0
          %1614 = vmatpush2.bf16.msra.mxu0 0
          %1615 = vmatprep.mubr.bf16.mxu0 0
          %1616 = vmatmul.mubr.bf16.gmra.mxu0 %v1578
          %v1617 = vpop.f32.mrf.mxu0
          %v1618 = vadd.f32 0.0, %v1617
          %v1619 = vpop.f32.mrf.mxu0
          %v1620 = vpop.f32.mrf.mxu0
          %v1621 = vpop.f32.mrf.mxu0
          %1622 = vdwg.mxu0
          %v1624 = vsel %vm850, %v1523, 0
          %v1627 = vsel %vm854, %v1529, 0
          %1629 = vmatprep.subr.bf16.mxu0 0
          %1630 = vmatpush1.bf16.msra.mxu0 0
          %1631 = vmatprep.subr.bf16.mxu0 0
          %1632 = vmatpush1.bf16.msra.mxu0 0
          %1633 = vmatprep.subr.bf16.mxu0 0
          %1634 = vmatpush1.bf16.msra.mxu0 0
          %1635 = vmatprep.subr.bf16.mxu0 0
          %1636 = vmatpush1.bf16.msra.mxu0 0
          %1637 = vmatprep.subr.bf16.mxu0 0
          %1638 = vmatpush1.bf16.msra.mxu0 0
          %1639 = vmatprep.subr.bf16.mxu0 0
          %1640 = vmatpush1.bf16.msra.mxu0 0
          %1641 = vmatprep.subr.bf16.mxu0 0
          %1642 = vmatpush1.bf16.msra.mxu0 0
          %1643 = vmatprep.subr.bf16.mxu0 0
          %1644 = vmatpush1.bf16.msra.mxu0 %v1627
          %1645 = vmatprep.subr.bf16.mxu0 0
          %1646 = vmatpush2.bf16.msra.mxu0 0
          %1647 = vmatprep.subr.bf16.mxu0 0
          %1648 = vmatpush2.bf16.msra.mxu0 0
          %1649 = vmatprep.subr.bf16.mxu0 0
          %1650 = vmatpush2.bf16.msra.mxu0 0
          %1651 = vmatprep.subr.bf16.mxu0 0
          %1652 = vmatpush2.bf16.msra.mxu0 0
          %1653 = vmatprep.subr.bf16.mxu0 0
          %1654 = vmatpush2.bf16.msra.mxu0 0
          %1655 = vmatprep.subr.bf16.mxu0 0
          %1656 = vmatpush2.bf16.msra.mxu0 0
          %1657 = vmatprep.subr.bf16.mxu0 0
          %1658 = vmatpush2.bf16.msra.mxu0 0
          %1659 = vmatprep.subr.bf16.mxu0 0
          %1660 = vmatpush2.bf16.msra.mxu0 0
          %1661 = vmatprep.mubr.bf16.mxu0 0
          %1662 = vmatmul.mubr.bf16.gmra.mxu0 %v1624
          %v1663 = vpop.f32.mrf.mxu0
          %v1664 = vadd.f32 0.0, %v1663
          %v1665 = vpop.f32.mrf.mxu0
          %v1666 = vpop.f32.mrf.mxu0
          %v1667 = vpop.f32.mrf.mxu0
          %1668 = vdwg.mxu0
          %v1670 = vsel %vm850, %v1524, 0
          %v1673 = vsel %vm854, %v1530, 0
          %1675 = vmatprep.subr.bf16.mxu0 0
          %1676 = vmatpush1.bf16.msra.mxu0 0
          %1677 = vmatprep.subr.bf16.mxu0 0
          %1678 = vmatpush1.bf16.msra.mxu0 0
          %1679 = vmatprep.subr.bf16.mxu0 0
          %1680 = vmatpush1.bf16.msra.mxu0 0
          %1681 = vmatprep.subr.bf16.mxu0 0
          %1682 = vmatpush1.bf16.msra.mxu0 0
          %1683 = vmatprep.subr.bf16.mxu0 0
          %1684 = vmatpush1.bf16.msra.mxu0 0
          %1685 = vmatprep.subr.bf16.mxu0 0
          %1686 = vmatpush1.bf16.msra.mxu0 0
          %1687 = vmatprep.subr.bf16.mxu0 0
          %1688 = vmatpush1.bf16.msra.mxu0 0
          %1689 = vmatprep.subr.bf16.mxu0 0
          %1690 = vmatpush1.bf16.msra.mxu0 %v1673
          %1691 = vmatprep.subr.bf16.mxu0 0
          %1692 = vmatpush2.bf16.msra.mxu0 0
          %1693 = vmatprep.subr.bf16.mxu0 0
          %1694 = vmatpush2.bf16.msra.mxu0 0
          %1695 = vmatprep.subr.bf16.mxu0 0
          %1696 = vmatpush2.bf16.msra.mxu0 0
          %1697 = vmatprep.subr.bf16.mxu0 0
          %1698 = vmatpush2.bf16.msra.mxu0 0
          %1699 = vmatprep.subr.bf16.mxu0 0
          %1700 = vmatpush2.bf16.msra.mxu0 0
          %1701 = vmatprep.subr.bf16.mxu0 0
          %1702 = vmatpush2.bf16.msra.mxu0 0
          %1703 = vmatprep.subr.bf16.mxu0 0
          %1704 = vmatpush2.bf16.msra.mxu0 0
          %1705 = vmatprep.subr.bf16.mxu0 0
          %1706 = vmatpush2.bf16.msra.mxu0 0
          %1707 = vmatprep.mubr.bf16.mxu0 0
          %1708 = vmatmul.mubr.bf16.gmra.mxu0 %v1670
          %v1709 = vpop.f32.mrf.mxu0
          %v1710 = vadd.f32 0.0, %v1709
          %v1711 = vpop.f32.mrf.mxu0
          %v1712 = vpop.f32.mrf.mxu0
          %v1713 = vpop.f32.mrf.mxu0
          %1714 = vdwg.mxu0
          %v1715 = vadd.f32 %v1517, %v1572
          %v1716 = vadd.f32 %v1518, %v1618
          %v1717 = vadd.f32 %v1519, %v1664
          %v1718 = vadd.f32 %v1520, %v1710
        $region105: #{tpu_custom_call.1} parent=71 // loop_footer
          %s1263 = sadd.s32 %s1261, 1
        $region106: #{tpu_custom_call.1} parent=71 // loop_footer_branch
          %1260 = sbr.rel target = $region102
        $region107: #{tpu_custom_call.1} parent=71 // loop_exit
          _
        %v1719 = vrcp.pop %v1270
        %v1720 = vrcp.pop %v1271
        %v1721 = vrcp.pop %v1272
        %v1722 = vrcp.pop %v1273
        %v1723 = vmul.f32 %v1274, %v1719
        %v1724 = vmul.f32 %v1275, %v1720
        %v1725 = vmul.f32 %v1276, %v1721
        %v1726 = vmul.f32 %v1277, %v1722
        %v1727 = vpack.c.bf16 %v1723, %v1723
        %v1728 = vld [vmem:[#allocation8] sm:$0xf]
        %v1729 = vpack.c.bf16 %v1724, %v1724
        %v1730 = vld [vmem:[#allocation8 + $0x4] sm:$0xf]
        %v1732 = vsel %vm850, %v1729, 0
        %v1735 = vsel %vm854, %v1730, 0
        %1737 = vmatprep.subr.bf16.mxu0 0
        %1738 = vmatpush1.bf16.msra.mxu0 0
        %1739 = vmatprep.subr.bf16.mxu0 0
        %1740 = vmatpush1.bf16.msra.mxu0 0
        %1741 = vmatprep.subr.bf16.mxu0 0
        %1742 = vmatpush1.bf16.msra.mxu0 0
        %1743 = vmatprep.subr.bf16.mxu0 0
        %1744 = vmatpush1.bf16.msra.mxu0 0
        %1745 = vmatprep.subr.bf16.mxu0 0
        %1746 = vmatpush1.bf16.msra.mxu0 0
        %1747 = vmatprep.subr.bf16.mxu0 0
        %1748 = vmatpush1.bf16.msra.mxu0 0
        %1749 = vmatprep.subr.bf16.mxu0 0
        %1750 = vmatpush1.bf16.msra.mxu0 0
        %1751 = vmatprep.subr.bf16.mxu0 0
        %1752 = vmatpush1.bf16.msra.mxu0 %v1735
        %1753 = vmatprep.subr.bf16.mxu0 0
        %1754 = vmatpush2.bf16.msra.mxu0 0
        %1755 = vmatprep.subr.bf16.mxu0 0
        %1756 = vmatpush2.bf16.msra.mxu0 0
        %1757 = vmatprep.subr.bf16.mxu0 0
        %1758 = vmatpush2.bf16.msra.mxu0 0
        %1759 = vmatprep.subr.bf16.mxu0 0
        %1760 = vmatpush2.bf16.msra.mxu0 0
        %1761 = vmatprep.subr.bf16.mxu0 0
        %1762 = vmatpush2.bf16.msra.mxu0 0
        %1763 = vmatprep.subr.bf16.mxu0 0
        %1764 = vmatpush2.bf16.msra.mxu0 0
        %1765 = vmatprep.subr.bf16.mxu0 0
        %1766 = vmatpush2.bf16.msra.mxu0 0
        %1767 = vmatprep.subr.bf16.mxu0 0
        %1768 = vmatpush2.bf16.msra.mxu0 0
        %1769 = vmatprep.mubr.bf16.mxu0 0
        %1770 = vmatmul.mubr.bf16.gmra.mxu0 %v1732
        %v1771 = vpop.f32.mrf.mxu0
        %v1772 = vadd.f32 0.0, %v1771
        %v1773 = vpop.f32.mrf.mxu0
        %v1774 = vpop.f32.mrf.mxu0
        %v1775 = vpop.f32.mrf.mxu0
        %1776 = vdwg.mxu0
        %v1778 = vsel %vm850, %v1727, 0
        %v1781 = vsel %vm854, %v1728, 0
        %1783 = vmatprep.subr.bf16.mxu0 0
        %1784 = vmatpush1.bf16.msra.mxu0 0
        %1785 = vmatprep.subr.bf16.mxu0 0
        %1786 = vmatpush1.bf16.msra.mxu0 0
        %1787 = vmatprep.subr.bf16.mxu0 0
        %1788 = vmatpush1.bf16.msra.mxu0 0
        %1789 = vmatprep.subr.bf16.mxu0 0
        %1790 = vmatpush1.bf16.msra.mxu0 0
        %1791 = vmatprep.subr.bf16.mxu0 0
        %1792 = vmatpush1.bf16.msra.mxu0 0
        %1793 = vmatprep.subr.bf16.mxu0 0
        %1794 = vmatpush1.bf16.msra.mxu0 0
        %1795 = vmatprep.subr.bf16.mxu0 0
        %1796 = vmatpush1.bf16.msra.mxu0 0
        %1797 = vmatprep.subr.bf16.mxu0 0
        %1798 = vmatpush1.bf16.msra.mxu0 %v1781
        %1799 = vmatprep.subr.bf16.mxu0 0
        %1800 = vmatpush2.bf16.msra.mxu0 0
        %1801 = vmatprep.subr.bf16.mxu0 0
        %1802 = vmatpush2.bf16.msra.mxu0 0
        %1803 = vmatprep.subr.bf16.mxu0 0
        %1804 = vmatpush2.bf16.msra.mxu0 0
        %1805 = vmatprep.subr.bf16.mxu0 0
        %1806 = vmatpush2.bf16.msra.mxu0 0
        %1807 = vmatprep.subr.bf16.mxu0 0
        %1808 = vmatpush2.bf16.msra.mxu0 0
        %1809 = vmatprep.subr.bf16.mxu0 0
        %1810 = vmatpush2.bf16.msra.mxu0 0
        %1811 = vmatprep.subr.bf16.mxu0 0
        %1812 = vmatpush2.bf16.msra.mxu0 0
        %1813 = vmatprep.subr.bf16.mxu0 0
        %1814 = vmatpush2.bf16.msra.mxu0 0
        %1815 = vmatprep.mubr.bf16.mxu0 0
        %1816 = vmatmul.mubr.bf16.gmra.mxu0 %v1778
        %v1817 = vpop.f32.mrf.mxu0
        %v1818 = vadd.f32 %v1772, %v1817
        %v1819 = vpop.f32.mrf.mxu0
        %v1820 = vpop.f32.mrf.mxu0
        %v1821 = vpop.f32.mrf.mxu0
        %1822 = vdwg.mxu0
        %v1823 = vpack.c.bf16 %v1725, %v1725
        %v1824 = vld [vmem:[#allocation8 + $0x8] sm:$0xf]
        %v1826 = vsel %vm850, %v1823, 0
        %v1829 = vsel %vm854, %v1824, 0
        %1831 = vmatprep.subr.bf16.mxu0 0
        %1832 = vmatpush1.bf16.msra.mxu0 0
        %1833 = vmatprep.subr.bf16.mxu0 0
        %1834 = vmatpush1.bf16.msra.mxu0 0
        %1835 = vmatprep.subr.bf16.mxu0 0
        %1836 = vmatpush1.bf16.msra.mxu0 0
        %1837 = vmatprep.subr.bf16.mxu0 0
        %1838 = vmatpush1.bf16.msra.mxu0 0
        %1839 = vmatprep.subr.bf16.mxu0 0
        %1840 = vmatpush1.bf16.msra.mxu0 0
        %1841 = vmatprep.subr.bf16.mxu0 0
        %1842 = vmatpush1.bf16.msra.mxu0 0
        %1843 = vmatprep.subr.bf16.mxu0 0
        %1844 = vmatpush1.bf16.msra.mxu0 0
        %1845 = vmatprep.subr.bf16.mxu0 0
        %1846 = vmatpush1.bf16.msra.mxu0 %v1829
        %1847 = vmatprep.subr.bf16.mxu0 0
        %1848 = vmatpush2.bf16.msra.mxu0 0
        %1849 = vmatprep.subr.bf16.mxu0 0
        %1850 = vmatpush2.bf16.msra.mxu0 0
        %1851 = vmatprep.subr.bf16.mxu0 0
        %1852 = vmatpush2.bf16.msra.mxu0 0
        %1853 = vmatprep.subr.bf16.mxu0 0
        %1854 = vmatpush2.bf16.msra.mxu0 0
        %1855 = vmatprep.subr.bf16.mxu0 0
        %1856 = vmatpush2.bf16.msra.mxu0 0
        %1857 = vmatprep.subr.bf16.mxu0 0
        %1858 = vmatpush2.bf16.msra.mxu0 0
        %1859 = vmatprep.subr.bf16.mxu0 0
        %1860 = vmatpush2.bf16.msra.mxu0 0
        %1861 = vmatprep.subr.bf16.mxu0 0
        %1862 = vmatpush2.bf16.msra.mxu0 0
        %1863 = vmatprep.mubr.bf16.mxu0 0
        %1864 = vmatmul.mubr.bf16.gmra.mxu0 %v1826
        %v1865 = vpop.f32.mrf.mxu0
        %v1866 = vadd.f32 0.0, %v1865
        %v1867 = vpop.f32.mrf.mxu0
        %v1868 = vpop.f32.mrf.mxu0
        %v1869 = vpop.f32.mrf.mxu0
        %1870 = vdwg.mxu0
        %v1871 = vadd.f32 %v1818, %v1866
        %v1872 = vpack.c.bf16 %v1726, %v1726
        %v1873 = vld [vmem:[#allocation8 + $0xc] sm:$0xf]
        %v1875 = vsel %vm850, %v1872, 0
        %v1878 = vsel %vm854, %v1873, 0
        %1880 = vmatprep.subr.bf16.mxu0 0
        %1881 = vmatpush1.bf16.msra.mxu0 0
        %1882 = vmatprep.subr.bf16.mxu0 0
        %1883 = vmatpush1.bf16.msra.mxu0 0
        %1884 = vmatprep.subr.bf16.mxu0 0
        %1885 = vmatpush1.bf16.msra.mxu0 0
        %1886 = vmatprep.subr.bf16.mxu0 0
        %1887 = vmatpush1.bf16.msra.mxu0 0
        %1888 = vmatprep.subr.bf16.mxu0 0
        %1889 = vmatpush1.bf16.msra.mxu0 0
        %1890 = vmatprep.subr.bf16.mxu0 0
        %1891 = vmatpush1.bf16.msra.mxu0 0
        %1892 = vmatprep.subr.bf16.mxu0 0
        %1893 = vmatpush1.bf16.msra.mxu0 0
        %1894 = vmatprep.subr.bf16.mxu0 0
        %1895 = vmatpush1.bf16.msra.mxu0 %v1878
        %1896 = vmatprep.subr.bf16.mxu0 0
        %1897 = vmatpush2.bf16.msra.mxu0 0
        %1898 = vmatprep.subr.bf16.mxu0 0
        %1899 = vmatpush2.bf16.msra.mxu0 0
        %1900 = vmatprep.subr.bf16.mxu0 0
        %1901 = vmatpush2.bf16.msra.mxu0 0
        %1902 = vmatprep.subr.bf16.mxu0 0
        %1903 = vmatpush2.bf16.msra.mxu0 0
        %1904 = vmatprep.subr.bf16.mxu0 0
        %1905 = vmatpush2.bf16.msra.mxu0 0
        %1906 = vmatprep.subr.bf16.mxu0 0
        %1907 = vmatpush2.bf16.msra.mxu0 0
        %1908 = vmatprep.subr.bf16.mxu0 0
        %1909 = vmatpush2.bf16.msra.mxu0 0
        %1910 = vmatprep.subr.bf16.mxu0 0
        %1911 = vmatpush2.bf16.msra.mxu0 0
        %1912 = vmatprep.mubr.bf16.mxu0 0
        %1913 = vmatmul.mubr.bf16.gmra.mxu0 %v1875
        %v1914 = vpop.f32.mrf.mxu0
        %v1915 = vadd.f32 0.0, %v1914
        %v1916 = vpop.f32.mrf.mxu0
        %v1917 = vpop.f32.mrf.mxu0
        %v1918 = vpop.f32.mrf.mxu0
        %1919 = vdwg.mxu0
        %v1920 = vadd.f32 %v1871, %v1915
        %v1921 = vld [vmem:[#allocation10] sm:$0x1]
        %v1923 = vlaneseq
        %v1924 = vshrl.u32 %v1923, 7
        %v1925 = vsub.s32 0, %v1924
        %v1926 = vrot.slane %v1921, %v1925
        %v1928 = vadd.f32 %v1920, %v1926
        %v1929 = vadd.f32 %v1928, %v557
        %v1930 = vld [vmem:[#allocation11] sm:$0x1]
        %v1931 = vld [vmem:[#allocation13] sm:$0x1]
        %v1932 = vsel %vm582, %v1929, 0.0
        %1933 = vadd.xlane.f32.xlu0 %v1932
        %v1934 = vpop.xlane.xlu0 %1933
        %v1935 = vrcp.pop 32.0
        %v1936 = vmul.f32 %v1934, %v1935
        %v1937 = vsub.f32 %v1929, %v1936
        %v1938 = vmul.f32 %v1937, %v1937
        %v1939 = vsel %vm582, %v1938, 0.0
        %1940 = vadd.xlane.f32.xlu0 %v1939
        %v1941 = vpop.xlane.xlu0 %1940
        %v1942 = vmul.f32 %v1941, %v1935
        %v1943 = vadd.f32 %v1942, 1e-05
        %v1944 = vrsqrt.pop %v1943
        %v1945 = vmul.f32 %v1937, %v1944
        %v1947 = vlaneseq
        %v1948 = vshrl.u32 %v1947, 7
        %v1949 = vsub.s32 0, %v1948
        %v1950 = vrot.slane %v1930, %v1949
        %v1952 = vmul.f32 %v1945, %v1950
        %v1954 = vlaneseq
        %v1955 = vshrl.u32 %v1954, 7
        %v1956 = vsub.s32 0, %v1955
        %v1957 = vrot.slane %v1931, %v1956
        %v1959 = vadd.f32 %v1952, %v1957
        %v1960 = vpack.c.bf16 %v1959, %v1959
        %v1961 = vld [vmem:[#allocation14] sm:$0xf]
        %v1962 = vld [vmem:[#allocation14 + $0x4] sm:$0xf]
        %v1963 = vld [vmem:[#allocation14 + $0x8] sm:$0xf]
        %v1964 = vld [vmem:[#allocation14 + $0xc] sm:$0xf]
        %v1965 = vld [vmem:[#allocation16] sm:$0x1]
        %v1967 = vlaneseq
        %v1968 = vshrl.u32 %v1967, 7
        %v1969 = vsub.s32 0, %v1968
        %v1970 = vrot.slane %v1965, %v1969
        %v1976 = vunpack.c.l.b16 %v1961
        %v1977 = vunpack.c.l.b16 %v1962
        %v1978 = vunpack.c.l.b16 %v1963
        %v1979 = vunpack.c.l.b16 %v1964
        %v1980 = vpack.c.b16 %v1977, %v1976
        %v1981 = vpack.c.b16 %v1979, %v1978
        %v1985 = vsel %vm582, %v1960, 0
        %1987 = vmatprep.subr.bf16.mxu0 0
        %1988 = vmatpush1.bf16.msra.mxu0 0
        %1989 = vmatprep.subr.bf16.mxu0 0
        %1990 = vmatpush1.bf16.msra.mxu0 0
        %1991 = vmatprep.subr.bf16.mxu0 0
        %1992 = vmatpush1.bf16.msra.mxu0 0
        %1993 = vmatprep.subr.bf16.mxu0 0
        %1994 = vmatpush1.bf16.msra.mxu0 0
        %1995 = vmatprep.subr.bf16.mxu0 0
        %1996 = vmatpush1.bf16.msra.mxu0 0
        %1997 = vmatprep.subr.bf16.mxu0 0
        %1998 = vmatpush1.bf16.msra.mxu0 0
        %1999 = vmatprep.subr.bf16.mxu0 0
        %2000 = vmatpush1.bf16.msra.mxu0 %v1981
        %2001 = vmatprep.subr.bf16.mxu0 0
        %2002 = vmatpush1.bf16.msra.mxu0 %v1980
        %2003 = vmatprep.subr.bf16.mxu0 0
        %2004 = vmatpush2.bf16.msra.mxu0 0
        %2005 = vmatprep.subr.bf16.mxu0 0
        %2006 = vmatpush2.bf16.msra.mxu0 0
        %2007 = vmatprep.subr.bf16.mxu0 0
        %2008 = vmatpush2.bf16.msra.mxu0 0
        %2009 = vmatprep.subr.bf16.mxu0 0
        %2010 = vmatpush2.bf16.msra.mxu0 0
        %2011 = vmatprep.subr.bf16.mxu0 0
        %2012 = vmatpush2.bf16.msra.mxu0 0
        %2013 = vmatprep.subr.bf16.mxu0 0
        %2014 = vmatpush2.bf16.msra.mxu0 0
        %2015 = vmatprep.subr.bf16.mxu0 0
        %2016 = vmatpush2.bf16.msra.mxu0 0
        %2017 = vmatprep.subr.bf16.mxu0 0
        %2018 = vmatpush2.bf16.msra.mxu0 0
        %2019 = vmatprep.mubr.bf16.mxu0 0
        %2020 = vmatmul.mubr.bf16.gmra.mxu0 %v1985
        %v2021 = vpop.f32.mrf.mxu0
        %v2022 = vadd.f32 %v1970, %v2021
        %v2023 = vpop.f32.mrf.mxu0
        %v2024 = vpop.f32.mrf.mxu0
        %v2025 = vpop.f32.mrf.mxu0
        %2026 = vdwg.mxu0
        %v2027 = vmax.f32 %v2022, 0.0
        %v2028 = vpack.c.bf16 %v2027, %v2027
        %v2029 = vld [vmem:[%s9] sm:$0xf]
        %v2030 = vld [vmem:[%s9 + $0x4] sm:$0xf]
        %v2031 = vld [vmem:[%s9 + $0x8] sm:$0xf]
        %v2032 = vld [vmem:[%s9 + $0xc] sm:$0xf]
        %v2033 = vld [vmem:[%s9 + $0x10] sm:$0xf]
        %v2034 = vld [vmem:[%s9 + $0x14] sm:$0xf]
        %v2035 = vld [vmem:[%s9 + $0x18] sm:$0xf]
        %v2036 = vld [vmem:[%s9 + $0x1c] sm:$0xf]
        %v2037 = vld [vmem:[%s10] sm:$0x1]
        %v2039 = vlaneseq
        %v2040 = vshrl.u32 %v2039, 7
        %v2041 = vsub.s32 0, %v2040
        %v2042 = vrot.slane %v2037, %v2041
        %v2052 = vunpack.c.l.b16 %v2029
        %v2053 = vunpack.c.l.b16 %v2030
        %v2054 = vunpack.c.l.b16 %v2031
        %v2055 = vunpack.c.l.b16 %v2032
        %v2056 = vunpack.c.l.b16 %v2033
        %v2057 = vunpack.c.l.b16 %v2034
        %v2058 = vunpack.c.l.b16 %v2035
        %v2059 = vunpack.c.l.b16 %v2036
        %v2060 = vpack.c.b16 %v2053, %v2052
        %v2061 = vpack.c.b16 %v2055, %v2054
        %v2062 = vpack.c.b16 %v2057, %v2056
        %v2063 = vpack.c.b16 %v2059, %v2058
        %vm2068 = vcmask 523264
        %v2070 = vsel %vm2068, %v2028, 0
        %2072 = vmatprep.subr.bf16.mxu0 0
        %2073 = vmatpush1.bf16.msra.mxu0 0
        %2074 = vmatprep.subr.bf16.mxu0 0
        %2075 = vmatpush1.bf16.msra.mxu0 0
        %2076 = vmatprep.subr.bf16.mxu0 0
        %2077 = vmatpush1.bf16.msra.mxu0 0
        %2078 = vmatprep.subr.bf16.mxu0 0
        %2079 = vmatpush1.bf16.msra.mxu0 0
        %2080 = vmatprep.subr.bf16.mxu0 0
        %2081 = vmatpush1.bf16.msra.mxu0 %v2063
        %2082 = vmatprep.subr.bf16.mxu0 0
        %2083 = vmatpush1.bf16.msra.mxu0 %v2062
        %2084 = vmatprep.subr.bf16.mxu0 0
        %2085 = vmatpush1.bf16.msra.mxu0 %v2061
        %2086 = vmatprep.subr.bf16.mxu0 0
        %2087 = vmatpush1.bf16.msra.mxu0 %v2060
        %2088 = vmatprep.subr.bf16.mxu0 0
        %2089 = vmatpush2.bf16.msra.mxu0 0
        %2090 = vmatprep.subr.bf16.mxu0 0
        %2091 = vmatpush2.bf16.msra.mxu0 0
        %2092 = vmatprep.subr.bf16.mxu0 0
        %2093 = vmatpush2.bf16.msra.mxu0 0
        %2094 = vmatprep.subr.bf16.mxu0 0
        %2095 = vmatpush2.bf16.msra.mxu0 0
        %2096 = vmatprep.subr.bf16.mxu0 0
        %2097 = vmatpush2.bf16.msra.mxu0 0
        %2098 = vmatprep.subr.bf16.mxu0 0
        %2099 = vmatpush2.bf16.msra.mxu0 0
        %2100 = vmatprep.subr.bf16.mxu0 0
        %2101 = vmatpush2.bf16.msra.mxu0 0
        %2102 = vmatprep.subr.bf16.mxu0 0
        %2103 = vmatpush2.bf16.msra.mxu0 0
        %2104 = vmatprep.mubr.bf16.mxu0 0
        %2105 = vmatmul.mubr.bf16.gmra.mxu0 %v2070
        %v2106 = vpop.f32.mrf.mxu0
        %v2107 = vadd.f32 %v2042, %v2106
        %v2108 = vpop.f32.mrf.mxu0
        %v2109 = vpop.f32.mrf.mxu0
        %v2110 = vpop.f32.mrf.mxu0
        %2111 = vdwg.mxu0
        %v2112 = vadd.f32 %v2107, %v1959
        %v2113 = vld [vmem:[%s11] sm:$0x1]
        %v2114 = vld [vmem:[%s12] sm:$0x1]
        %v2115 = vsel %vm582, %v2112, 0.0
        %2116 = vadd.xlane.f32.xlu0 %v2115
        %v2117 = vpop.xlane.xlu0 %2116
        %v2118 = vmul.f32 %v2117, %v1935
        %v2119 = vsub.f32 %v2112, %v2118
        %v2120 = vmul.f32 %v2119, %v2119
        %v2121 = vsel %vm582, %v2120, 0.0
        %2122 = vadd.xlane.f32.xlu0 %v2121
        %v2123 = vpop.xlane.xlu0 %2122
        %v2124 = vmul.f32 %v2123, %v1935
        %v2125 = vadd.f32 %v2124, 1e-05
        %v2126 = vrsqrt.pop %v2125
        %v2127 = vmul.f32 %v2119, %v2126
        %v2129 = vlaneseq
        %v2130 = vshrl.u32 %v2129, 7
        %v2131 = vsub.s32 0, %v2130
        %v2132 = vrot.slane %v2113, %v2131
        %v2134 = vmul.f32 %v2127, %v2132
        %v2136 = vlaneseq
        %v2137 = vshrl.u32 %v2136, 7
        %v2138 = vsub.s32 0, %v2137
        %v2139 = vrot.slane %v2114, %v2138
        %v2141 = vadd.f32 %v2134, %v2139
        %2142 = vst.msk [vmem:[%s547] sm:$0xff] %vm582, %v2141
        %s2143 = sand.u32 %s333, 1
        %s2144 = scalar_lea.sflag [#allocation7], %s2143
        %s2145 = sand.u32 %s333, 1
        %s2146 = smul.addr %s2145, 8
        %s2147 = scalar_lea.vmem [#allocation17], %s2146
        // Predicated region
        $region108: #{tpu_custom_call.1} parent=71 // pred_check
          %p2148 = pneg %p343
        $region109: #{tpu_custom_call.1} parent=71 // pred_check_branch
          %2150 = sbr.rel (%p2148) target = $region111
        $region110: #{tpu_custom_call.1} parent=71 // pred_region
          %s2152 = ssub.s32 128, 128
          %2153 = vsyncadd %s2144, %s2152
          %s2154 = smul.addr %s35, 2
          %s2155 = sadd.s32 %s36, %s2154
          %s2156 = smul.addr %s2155, 128
          %s2157 = scalar_lea.hbm %s13, %s2156
          %s2159 = sshll.u32 %s2147, 4
          %s2160 = int_to_ptr.vmem [resolvable:$true] %s2159
          %2162 = dma.vmem_to_hbm [thread:$0]  %s2160, 128, %s2157, %s2144
        $region111: #{tpu_custom_call.1} parent=71 // pred_fallthru
          _
      $region72: #{tpu_custom_call.1} parent=5 // pred_fallthru
        _
      %p2163 = scmp.le.s32.totalorder 2, %s26
      // Predicated region
      $region112: #{tpu_custom_call.1} parent=5 // pred_check
        %p2164 = pneg %p2163
      $region113: #{tpu_custom_call.1} parent=5 // pred_check_branch
        %2166 = sbr.rel (%p2164) target = $region115
      $region114: #{tpu_custom_call.1} parent=5 // pred_region
        %s2167 = ssub.s32 %s26, 2
        // Predicated region
        $region116: #{tpu_custom_call.1} parent=114 // pred_check
          %p2168 = pneg %p349
        $region117: #{tpu_custom_call.1} parent=114 // pred_check_branch
          %2170 = sbr.rel (%p2168) target = $region119
        $region118: #{tpu_custom_call.1} parent=114 // pred_region
          %s2171 = sand.u32 %s334, 1
          %s2172 = scalar_lea.sflag [#allocation7], %s2171
          %s2173 = sand.u32 %s334, 1
          %s2174 = smul.addr %s2173, 8
          %s2175 = scalar_lea.vmem [#allocation17], %s2174
          %2176 = dma.done %s2172, 128
        $region119: #{tpu_custom_call.1} parent=114 // pred_fallthru
          _
      $region115: #{tpu_custom_call.1} parent=5 // pred_fallthru
        _
    $region6: #{tpu_custom_call.1} parent=1 // loop_footer
      %s30 = sadd.s32 1, %s26
    $region7: #{tpu_custom_call.1} parent=1 // loop_footer_branch
      %25 = sbr.rel target = $region3
    $region8: #{tpu_custom_call.1} parent=1 // loop_exit
      _
    %2177 = vsyncpa [#allocation6], 1
    %s2178 = scalar_lea.sflag [#allocation6], 1
    %2179 = vsyncpa %s2178, 1
    %2180 = vsyncpa [#allocation9], 1
    %2181 = vsyncpa [#allocation12], 1
    %2182 = vsyncpa [#allocation15], 1
    %2183 = vsyncpa [#allocation7], 1
    %s2184 = scalar_lea.sflag [#allocation7], 1
    %2185 = vsyncpa %s2184, 1

</llo_original>
